<compile_context>
chip_gen: v7x
topology: tpu7x:2x2x1
jax: 0.10.0
libtpu: 0.0.40
codegen_flags: <defaults>
</compile_context>

<pallas_src>
import jax
import jax.numpy as jnp
import numpy as np
from jax.experimental import pallas as pl
from jax.experimental.pallas import tpu as pltpu

# ---------------------------------------------------------------------------
# static shapes (small, consistent with the module)
# ---------------------------------------------------------------------------
B, C_IN, H, W = 2, 4, 16, 16
C_MID = 32                  # backbone output channels == self.feature
D = 128                     # linear / MCB output dim
CLIN = 5
BN_EPS = 1e-5

HP = H + 2                  # padded height
WPC = (W + 2) * C_IN        # padded width * in-channels = 72  (lane dim, image rows)
WCM = W * C_MID             # width * mid-channels       = 512 (lane dim, conv acts)


# ---------------------------------------------------------------------------
# Fused kernel: conv3x3 + ReLU + GAP + linear/clinical + MCB + BN(eval) + ReLU
# ---------------------------------------------------------------------------
def _fused_kernel(xpf_ref, mconv_ref, pool_ref, w1_ref, w2_ref, winv_ref,
                  vecs_ref, clin_ref, out_ref):
    # ---- conv3x3(pad=1) + bias + ReLU as 3 banded matmuls (bf16 in, f32 acc) ----
    xpf = xpf_ref[...]                                          # (B*HP, WPC) bf16
    acts = jnp.dot(xpf[0:B * HP - 2, :], mconv_ref[0],
                   preferred_element_type=jnp.float32)
    acts = acts + jnp.dot(xpf[1:B * HP - 1, :], mconv_ref[1],
                          preferred_element_type=jnp.float32)
    acts = acts + jnp.dot(xpf[2:B * HP, :], mconv_ref[2],
                          preferred_element_type=jnp.float32)
    acts = jnp.maximum(acts + vecs_ref[0:1, :], 0.0)            # (B*HP-2, WCM)

    # ---- global average pool: mean over y (rows, per batch), then over x via matmul ----
    ym = jnp.concatenate(
        [jnp.mean(acts[b * HP:b * HP + H, :], axis=0, keepdims=True)
         for b in range(B)], axis=0)                            # (B, WCM)
    feats = jnp.dot(ym, pool_ref[...],
                    preferred_element_type=jnp.float32)         # (B, C_MID)

    # ---- folded (linear -> count-sketch -> forward DFT), both branches ----
    a_fft = jnp.dot(feats, w1_ref[...],
                    preferred_element_type=jnp.float32) + vecs_ref[1:2, 0:2 * D]
    b_fft = jnp.dot(clin_ref[...], w2_ref[...],
                    preferred_element_type=jnp.float32) + vecs_ref[2:3, 0:2 * D]
    a_re, a_im = a_fft[:, 0:D], a_fft[:, D:2 * D]
    b_re, b_im = b_fft[:, 0:D], b_fft[:, D:2 * D]
    prod = jnp.concatenate([a_re * b_re - a_im * b_im,
                            a_re * b_im + a_im * b_re], axis=-1)  # (B, 2D)

    # ---- inverse DFT (real part) with 1/D and BN(eval) scale folded in, + shift, ReLU ----
    y = jnp.dot(prod, winv_ref[...],
                preferred_element_type=jnp.float32) + vecs_ref[3:4, 0:D]
    out_ref[...] = jnp.maximum(y, 0.0)


# ---------------------------------------------------------------------------
# Pallas wrapper (whole arrays resident in VMEM, no grid — shapes are tiny)
# ---------------------------------------------------------------------------
def _vmem_spec():
    return pl.BlockSpec(memory_space=pltpu.MemorySpace.VMEM)


def fused_forward_pallas(xpf, clinical, fp):
    args = (xpf, fp["mconv"], fp["pool"], fp["w1p"], fp["w2p"], fp["winv"],
            fp["vecs"], clinical)
    return pl.pallas_call(
        _fused_kernel,
        out_shape=jax.ShapeDtypeStruct((B, D), jnp.float32),
        in_specs=[_vmem_spec() for _ in args],
        out_specs=_vmem_spec(),
    )(*args)


def cnn_with_clinical_forward(x_nchw, clinical_features, folded_params):
    # tiny layout glue (~10 KB): NCHW -> NHWC, pad by 1, flatten (W, C) into lanes, bf16
    x = jnp.transpose(x_nchw, (0, 2, 3, 1))
    xp = jnp.pad(x, ((0, 0), (1, 1), (1, 1), (0, 0)))
    xpf = xp.reshape(B * HP, WPC).astype(jnp.bfloat16)
    return fused_forward_pallas(xpf, clinical_features.astype(jnp.float32),
                                folded_params)


# ---------------------------------------------------------------------------
# Base parameters (module semantics) and offline algebraic folding
# ---------------------------------------------------------------------------
def build_params(key):
    ks = jax.random.split(key, 14)
    p = {}
    p["w_conv"] = 0.1 * jax.random.normal(ks[0], (3, 3, C_IN, C_MID), jnp.float32)
    p["b_conv"] = 0.1 * jax.random.normal(ks[1], (C_MID,), jnp.float32)
    p["w_lin"] = jax.random.normal(ks[2], (C_MID, D), jnp.float32) / np.sqrt(C_MID)
    p["b_lin"] = 0.1 * jax.random.normal(ks[3], (D,), jnp.float32)
    p["w_clin"] = jax.random.normal(ks[4], (CLIN, CLIN), jnp.float32) / np.sqrt(CLIN)
    p["b_clin"] = 0.1 * jax.random.normal(ks[5], (CLIN,), jnp.float32)
    # CompactBilinearPooling count-sketch matrices (hash h, sign s), dense
    h1 = jax.random.randint(ks[6], (D,), 0, D)
    s1 = 2.0 * jax.random.randint(ks[7], (D,), 0, 2).astype(jnp.float32) - 1.0
    p["S1"] = jax.nn.one_hot(h1, D, dtype=jnp.float32) * s1[:, None]     # (D, D)
    h2 = jax.random.randint(ks[8], (CLIN,), 0, D)
    s2 = 2.0 * jax.random.randint(ks[9], (CLIN,), 0, 2).astype(jnp.float32) - 1.0
    p["S2"] = jax.nn.one_hot(h2, D, dtype=jnp.float32) * s2[:, None]     # (5, D)
    # BatchNorm1d(128) affine params + running stats (eval-mode semantics)
    p["gamma"] = 1.0 + 0.1 * jax.random.normal(ks[10], (D,), jnp.float32)
    p["beta"] = 0.1 * jax.random.normal(ks[11], (D,), jnp.float32)
    p["running_mean"] = 0.1 * jax.random.normal(ks[12], (D,), jnp.float32)
    p["running_var"] = 1.0 + 0.5 * jax.random.uniform(ks[13], (D,), jnp.float32)
    return p


def fold_params(p):
    """One-time parameter folding into the matrices the fused kernel consumes."""
    wc = np.asarray(p["w_conv"], np.float32)                      # (3, 3, C_IN, C_MID)

    # banded conv matrices: m[ky, j*C_IN + c, x*C_MID + o] = wc[ky, j-x, c, o]
    m = np.zeros((3, WPC, WCM), np.float32)
    for ky in range(3):
        for x in range(W):
            for kx in range(3):
                j = x + kx
                m[ky, j * C_IN:(j + 1) * C_IN,
                  x * C_MID:(x + 1) * C_MID] = wc[ky, kx]
    cbias = np.tile(np.asarray(p["b_conv"], np.float32), W)       # (WCM,)
    pool = np.tile(np.eye(C_MID, dtype=np.float32), (W, 1)) / np.float32(W)  # (WCM, C_MID)

    # DFT matrices for the MCB circular convolution
    n = np.arange(D, dtype=np.float64)
    ang = 2.0 * np.pi * np.outer(n, n) / D
    f_re = np.cos(ang).astype(np.float32)
    f_im = (-np.sin(ang)).astype(np.float32)
    f_fwd = np.concatenate([f_re, f_im], axis=1)                  # (D, 2D)

    s1 = np.asarray(p["S1"], np.float32)
    s2 = np.asarray(p["S2"], np.float32)
    w1p = np.asarray(p["w_lin"], np.float32) @ s1 @ f_fwd         # (C_MID, 2D)
    b1p = np.asarray(p["b_lin"], np.float32)[None, :] @ s1 @ f_fwd
    w2p = np.asarray(p["w_clin"], np.float32) @ s2 @ f_fwd        # (CLIN, 2D)
    b2p = np.asarray(p["b_clin"], np.float32)[None, :] @ s2 @ f_fwd

    # eval-mode BatchNorm folded into the inverse-DFT matrix / shift vector
    scale = np.asarray(p["gamma"], np.float32) / np.sqrt(
        np.asarray(p["running_var"], np.float32) + BN_EPS)        # (D,)
    shift = (np.asarray(p["beta"], np.float32)
             - np.asarray(p["running_mean"], np.float32) * scale)
    winv = (np.concatenate([f_re, f_im], axis=0) / D) * scale[None, :]   # (2D, D)

    vecs = np.zeros((4, WCM), np.float32)     # packed small-vector slab
    vecs[0, :] = cbias
    vecs[1, :2 * D] = b1p[0]
    vecs[2, :2 * D] = b2p[0]
    vecs[3, :D] = shift

    return {
        "mconv": jnp.asarray(m, jnp.bfloat16),
        "pool": jnp.asarray(pool),
        "w1p": jnp.asarray(w1p),
        "w2p": jnp.asarray(w2p),
        "winv": jnp.asarray(winv),
        "vecs": jnp.asarray(vecs),
    }


# ---------------------------------------------------------------------------
# Pure-JAX reference (module semantics, unfolded params) — validates both the
# kernel and the algebraic folding.
# ---------------------------------------------------------------------------
def reference_forward(x_nchw, clinical_features, p):
    w_oihw = jnp.transpose(p["w_conv"], (3, 2, 0, 1))
    conv = jax.lax.conv_general_dilated(
        x_nchw, w_oihw, window_strides=(1, 1), padding="SAME",
        dimension_numbers=("NCHW", "OIHW", "NCHW"))
    conv = jnp.maximum(conv + p["b_conv"][None, :, None, None], 0.0)
    feats = jnp.mean(conv, axis=(2, 3))                           # (B, C_MID)
    x = feats @ p["w_lin"] + p["b_lin"]
    c = clinical_features @ p["w_clin"] + p["b_clin"]
    psi1 = x @ p["S1"]
    psi2 = c @ p["S2"]
    cbp = jnp.fft.ifft(jnp.fft.fft(psi1, axis=-1) * jnp.fft.fft(psi2, axis=-1),
                       axis=-1).real.astype(jnp.float32)
    scale = p["gamma"] * jax.lax.rsqrt(p["running_var"] + BN_EPS)
    y = (cbp - p["running_mean"]) * scale + p["beta"]
    return jnp.maximum(y, 0.0)


if __name__ == "__main__":
    key = jax.random.PRNGKey(0)
    k_x, k_c, k_p = jax.random.split(key, 3)

    x = jax.random.normal(k_x, (B, C_IN, H, W), jnp.float32)      # NCHW like PyTorch
    clinical_features = jax.random.normal(k_c, (B, CLIN), jnp.float32)

    params = build_params(k_p)
    folded = fold_params(params)

    fwd = jax.jit(cnn_with_clinical_forward)
    out = jax.block_until_ready(fwd(x, clinical_features, folded))

    ref = jax.block_until_ready(reference_forward(x, clinical_features, params))
    np.testing.assert_allclose(np.asarray(out), np.asarray(ref), rtol=2e-2, atol=2e-2)

    assert out.shape == (B, D)
    print("KERNEL_OK")
</pallas_src>

<mosaic_0001>
module attributes {stable_mosaic.version = 11 : i64} {
  func.func @_fused_kernel(%arg0: memref<36x72xbf16, #tpu.memory_space<vmem>>, %arg1: memref<3x72x512xbf16, #tpu.memory_space<vmem>>, %arg2: memref<512x32xf32, #tpu.memory_space<vmem>>, %arg3: memref<32x256xf32, #tpu.memory_space<vmem>>, %arg4: memref<5x256xf32, #tpu.memory_space<vmem>>, %arg5: memref<256x128xf32, #tpu.memory_space<vmem>>, %arg6: memref<4x512xf32, #tpu.memory_space<vmem>>, %arg7: memref<2x5xf32, #tpu.memory_space<vmem>>, %arg8: memref<2x128xf32, #tpu.memory_space<vmem>>) attributes {dimension_semantics = [], scalar_prefetch = 0 : i64, scratch_operands = 0 : i64, tpu.core_type = #tpu.core_type<tc>} {
    %c0 = arith.constant 0 : index
    %c0_0 = arith.constant 0 : index
    %0 = vector.load %arg0[%c0, %c0_0] : memref<36x72xbf16, #tpu.memory_space<vmem>>, vector<36x72xbf16>
    %1 = vector.extract_strided_slice %0 {offsets = [0, 0], sizes = [34, 72], strides = [1, 1]} : vector<36x72xbf16> to vector<34x72xbf16>
    %c0_1 = arith.constant 0 : index
    %c0_2 = arith.constant 0 : index
    %c0_3 = arith.constant 0 : index
    %2 = vector.load %arg1[%c0_1, %c0_2, %c0_3] : memref<3x72x512xbf16, #tpu.memory_space<vmem>>, vector<1x72x512xbf16>
    %3 = vector.shape_cast %2 : vector<1x72x512xbf16> to vector<72x512xbf16>
    %cst = arith.constant dense<0.000000e+00> : vector<34x512xf32>
    %4 = tpu.matmul %1, %3, %cst {dimension_numbers = #tpu.dot_dimension_numbers<[1], [0], [0], [1], [0, 0, 1, 1], [], []>} : vector<34x72xbf16>, vector<72x512xbf16>, vector<34x512xf32> -> vector<34x512xf32>
    %5 = vector.extract_strided_slice %0 {offsets = [1, 0], sizes = [34, 72], strides = [1, 1]} : vector<36x72xbf16> to vector<34x72xbf16>
    %c1 = arith.constant 1 : index
    %c0_4 = arith.constant 0 : index
    %c0_5 = arith.constant 0 : index
    %6 = vector.load %arg1[%c1, %c0_4, %c0_5] : memref<3x72x512xbf16, #tpu.memory_space<vmem>>, vector<1x72x512xbf16>
    %7 = vector.shape_cast %6 : vector<1x72x512xbf16> to vector<72x512xbf16>
    %cst_6 = arith.constant dense<0.000000e+00> : vector<34x512xf32>
    %8 = tpu.matmul %5, %7, %cst_6 {dimension_numbers = #tpu.dot_dimension_numbers<[1], [0], [0], [1], [0, 0, 1, 1], [], []>} : vector<34x72xbf16>, vector<72x512xbf16>, vector<34x512xf32> -> vector<34x512xf32>
    %9 = arith.addf %4, %8 : vector<34x512xf32>
    %10 = vector.extract_strided_slice %0 {offsets = [2, 0], sizes = [34, 72], strides = [1, 1]} : vector<36x72xbf16> to vector<34x72xbf16>
    %c2 = arith.constant 2 : index
    %c0_7 = arith.constant 0 : index
    %c0_8 = arith.constant 0 : index
    %11 = vector.load %arg1[%c2, %c0_7, %c0_8] : memref<3x72x512xbf16, #tpu.memory_space<vmem>>, vector<1x72x512xbf16>
    %12 = vector.shape_cast %11 : vector<1x72x512xbf16> to vector<72x512xbf16>
    %cst_9 = arith.constant dense<0.000000e+00> : vector<34x512xf32>
    %13 = tpu.matmul %10, %12, %cst_9 {dimension_numbers = #tpu.dot_dimension_numbers<[1], [0], [0], [1], [0, 0, 1, 1], [], []>} : vector<34x72xbf16>, vector<72x512xbf16>, vector<34x512xf32> -> vector<34x512xf32>
    %14 = arith.addf %9, %13 : vector<34x512xf32>
    %c0_10 = arith.constant 0 : index
    %c0_11 = arith.constant 0 : index
    %15 = vector.load %arg6[%c0_10, %c0_11] : memref<4x512xf32, #tpu.memory_space<vmem>>, vector<1x512xf32>
    %16 = vector.broadcast %15 : vector<1x512xf32> to vector<34x512xf32>
    %17 = arith.addf %14, %16 : vector<34x512xf32>
    %cst_12 = arith.constant 0.000000e+00 : f32
    %18 = vector.broadcast %cst_12 : f32 to vector<34x512xf32>
    %19 = arith.maximumf %17, %18 : vector<34x512xf32>
    %20 = vector.extract_strided_slice %19 {offsets = [0, 0], sizes = [16, 512], strides = [1, 1]} : vector<34x512xf32> to vector<16x512xf32>
    %cst_13 = arith.constant dense<0.000000e+00> : vector<512xf32>
    %21 = vector.multi_reduction <add>, %20, %cst_13 [0] : vector<16x512xf32> to vector<512xf32>
    %22 = vector.shape_cast %21 : vector<512xf32> to vector<1x512xf32>
    %cst_14 = arith.constant 1.600000e+01 : f32
    %23 = vector.broadcast %cst_14 : f32 to vector<1x512xf32>
    %24 = arith.divf %22, %23 : vector<1x512xf32>
    %25 = vector.extract_strided_slice %19 {offsets = [18, 0], sizes = [16, 512], strides = [1, 1]} : vector<34x512xf32> to vector<16x512xf32>
    %cst_15 = arith.constant dense<0.000000e+00> : vector<512xf32>
    %26 = vector.multi_reduction <add>, %25, %cst_15 [0] : vector<16x512xf32> to vector<512xf32>
    %27 = vector.shape_cast %26 : vector<512xf32> to vector<1x512xf32>
    %cst_16 = arith.constant 1.600000e+01 : f32
    %28 = vector.broadcast %cst_16 : f32 to vector<1x512xf32>
    %29 = arith.divf %27, %28 : vector<1x512xf32>
    %30 = tpu.concatenate %24, %29 in 0 : vector<1x512xf32>, vector<1x512xf32> -> vector<2x512xf32>
    %c0_17 = arith.constant 0 : index
    %c0_18 = arith.constant 0 : index
    %31 = vector.load %arg2[%c0_17, %c0_18] : memref<512x32xf32, #tpu.memory_space<vmem>>, vector<512x32xf32>
    %cst_19 = arith.constant dense<0.000000e+00> : vector<2x32xf32>
    %32 = tpu.matmul %30, %31, %cst_19 {dimension_numbers = #tpu.dot_dimension_numbers<[1], [0], [0], [1], [0, 0, 1, 1], [], []>} : vector<2x512xf32>, vector<512x32xf32>, vector<2x32xf32> -> vector<2x32xf32>
    %c0_20 = arith.constant 0 : index
    %c0_21 = arith.constant 0 : index
    %33 = vector.load %arg3[%c0_20, %c0_21] : memref<32x256xf32, #tpu.memory_space<vmem>>, vector<32x256xf32>
    %cst_22 = arith.constant dense<0.000000e+00> : vector<2x256xf32>
    %34 = tpu.matmul %32, %33, %cst_22 {dimension_numbers = #tpu.dot_dimension_numbers<[1], [0], [0], [1], [0, 0, 1, 1], [], []>} : vector<2x32xf32>, vector<32x256xf32>, vector<2x256xf32> -> vector<2x256xf32>
    %c1_23 = arith.constant 1 : index
    %c0_24 = arith.constant 0 : index
    %35 = vector.load %arg6[%c1_23, %c0_24] : memref<4x512xf32, #tpu.memory_space<vmem>>, vector<1x256xf32>
    %36 = vector.broadcast %35 : vector<1x256xf32> to vector<2x256xf32>
    %37 = arith.addf %34, %36 : vector<2x256xf32>
    %c0_25 = arith.constant 0 : index
    %c0_26 = arith.constant 0 : index
    %38 = vector.load %arg7[%c0_25, %c0_26] : memref<2x5xf32, #tpu.memory_space<vmem>>, vector<2x5xf32>
    %c0_27 = arith.constant 0 : index
    %c0_28 = arith.constant 0 : index
    %39 = vector.load %arg4[%c0_27, %c0_28] : memref<5x256xf32, #tpu.memory_space<vmem>>, vector<5x256xf32>
    %cst_29 = arith.constant dense<0.000000e+00> : vector<2x256xf32>
    %40 = tpu.matmul %38, %39, %cst_29 {dimension_numbers = #tpu.dot_dimension_numbers<[1], [0], [0], [1], [0, 0, 1, 1], [], []>} : vector<2x5xf32>, vector<5x256xf32>, vector<2x256xf32> -> vector<2x256xf32>
    %c2_30 = arith.constant 2 : index
    %c0_31 = arith.constant 0 : index
    %41 = vector.load %arg6[%c2_30, %c0_31] : memref<4x512xf32, #tpu.memory_space<vmem>>, vector<1x256xf32>
    %42 = vector.broadcast %41 : vector<1x256xf32> to vector<2x256xf32>
    %43 = arith.addf %40, %42 : vector<2x256xf32>
    %44 = vector.extract_strided_slice %37 {offsets = [0, 0], sizes = [2, 128], strides = [1, 1]} : vector<2x256xf32> to vector<2x128xf32>
    %45 = vector.extract_strided_slice %37 {offsets = [0, 128], sizes = [2, 128], strides = [1, 1]} : vector<2x256xf32> to vector<2x128xf32>
    %46 = vector.extract_strided_slice %43 {offsets = [0, 0], sizes = [2, 128], strides = [1, 1]} : vector<2x256xf32> to vector<2x128xf32>
    %47 = vector.extract_strided_slice %43 {offsets = [0, 128], sizes = [2, 128], strides = [1, 1]} : vector<2x256xf32> to vector<2x128xf32>
    %48 = arith.mulf %44, %46 : vector<2x128xf32>
    %49 = arith.mulf %45, %47 : vector<2x128xf32>
    %50 = arith.subf %48, %49 : vector<2x128xf32>
    %51 = arith.mulf %44, %47 : vector<2x128xf32>
    %52 = arith.mulf %45, %46 : vector<2x128xf32>
    %53 = arith.addf %51, %52 : vector<2x128xf32>
    %54 = tpu.concatenate %50, %53 in 1 : vector<2x128xf32>, vector<2x128xf32> -> vector<2x256xf32>
    %c0_32 = arith.constant 0 : index
    %c0_33 = arith.constant 0 : index
    %55 = vector.load %arg5[%c0_32, %c0_33] : memref<256x128xf32, #tpu.memory_space<vmem>>, vector<256x128xf32>
    %cst_34 = arith.constant dense<0.000000e+00> : vector<2x128xf32>
    %56 = tpu.matmul %54, %55, %cst_34 {dimension_numbers = #tpu.dot_dimension_numbers<[1], [0], [0], [1], [0, 0, 1, 1], [], []>} : vector<2x256xf32>, vector<256x128xf32>, vector<2x128xf32> -> vector<2x128xf32>
    %c3 = arith.constant 3 : index
    %c0_35 = arith.constant 0 : index
    %57 = vector.load %arg6[%c3, %c0_35] : memref<4x512xf32, #tpu.memory_space<vmem>>, vector<1x128xf32>
    %58 = vector.broadcast %57 : vector<1x128xf32> to vector<2x128xf32>
    %59 = arith.addf %56, %58 : vector<2x128xf32>
    %cst_36 = arith.constant 0.000000e+00 : f32
    %60 = vector.broadcast %cst_36 : f32 to vector<2x128xf32>
    %61 = arith.maximumf %59, %60 : vector<2x128xf32>
    %c0_37 = arith.constant 0 : index
    %c0_38 = arith.constant 0 : index
    %62 = vector.load %arg8[%c0_37, %c0_38] : memref<2x128xf32, #tpu.memory_space<vmem>>, vector<2x128xf32>
    tpu.vector_store %arg8[%c0_37, %c0_38], %61 {strides = array<i32>} : memref<2x128xf32, #tpu.memory_space<vmem>>, vector<2x128xf32>,
    return
  }
}

</mosaic_0001>

<llo_original>
// kernel: cnn_with_clinical_forward.1
$region0: #{cnn_with_clinical_forward.1}
  #allocation0 [shape = 'u32[]', space=smem, size = 0x4, offset = 0x4, fixed_abs, tag = 'smem constant byte address 0x4 - core index']
  #allocation1 [shape = 'u32[144,128]{1,0:T(1,128)}', space=vmem, size = 0x12000, scoped, tag = 'internal scratch']
  %s0 = inlined_call_operand.vmem [shape: bf16[36,72], index: 0, kind: input, shape index: {}]
  %s1 = inlined_call_operand.vmem [shape: bf16[3,72,512], index: 1, kind: input, shape index: {}]
  %s2 = inlined_call_operand.vmem [shape: f32[512,32], index: 2, kind: input, shape index: {}]
  %s3 = inlined_call_operand.vmem [shape: f32[32,256], index: 3, kind: input, shape index: {}]
  %s4 = inlined_call_operand.vmem [shape: f32[5,256], index: 4, kind: input, shape index: {}]
  %s5 = inlined_call_operand.vmem [shape: f32[256,128], index: 5, kind: input, shape index: {}]
  %s6 = inlined_call_operand.vmem [shape: f32[4,512], index: 6, kind: input, shape index: {}]
  %s7 = inlined_call_operand.vmem [shape: f32[2,5], index: 7, kind: input, shape index: {}]
  %s8 = inlined_call_operand.hbm [shape: f32[2,128], index: 8, kind: output, shape index: {}]
  %s9 = sld [smem:[#allocation0]]
  $region42: #{cnn_with_clinical_forward.1} parent=0
    _
  %s11 = ssub.s32 1, %s9
  %s12 = scalar_select 0, %s11, %s9
  $region1: #{cnn_with_clinical_forward.1} parent=0
    #allocation2 [shape = 'u8[1024]{0}', space=vmem, size = 0x400, scoped, tag = 'output window, operand 0, single buffered']
    #allocation3 [shape = 's32[1]{0}', space=sflag, size = 0x4, scoped, tag = 'scoped memory for cnn_with_clinical_forward.1']
    %13 = vsyncpa [#allocation3], 0
    // Predicated region
    $region2: #{cnn_with_clinical_forward.1} parent=1 // pred_check
      _
    $region3: #{cnn_with_clinical_forward.1} parent=1 // pred_check_branch
      %15 = sbr.rel (0) target = $region5
    $region4: #{cnn_with_clinical_forward.1} parent=1 // pred_region
      _
    $region5: #{cnn_with_clinical_forward.1} parent=1 // pred_fallthru
      _
    // Predicated region
    $region6: #{cnn_with_clinical_forward.1} parent=1 // pred_check
      _
    $region7: #{cnn_with_clinical_forward.1} parent=1 // pred_check_branch
      %17 = sbr.rel (0) target = $region9
    $region8: #{cnn_with_clinical_forward.1} parent=1 // pred_region
      _
    $region9: #{cnn_with_clinical_forward.1} parent=1 // pred_fallthru
      _
    // Predicated region
    $region10: #{cnn_with_clinical_forward.1} parent=1 // pred_check
      _
    $region11: #{cnn_with_clinical_forward.1} parent=1 // pred_check_branch
      %19 = sbr.rel (0) target = $region13
    $region12: #{cnn_with_clinical_forward.1} parent=1 // pred_region
      _
    $region13: #{cnn_with_clinical_forward.1} parent=1 // pred_fallthru
      _
    // Predicated region
    $region14: #{cnn_with_clinical_forward.1} parent=1 // pred_check
      _
    $region15: #{cnn_with_clinical_forward.1} parent=1 // pred_check_branch
      %21 = sbr.rel (0) target = $region17
    $region16: #{cnn_with_clinical_forward.1} parent=1 // pred_region
      _
    $region17: #{cnn_with_clinical_forward.1} parent=1 // pred_fallthru
      _
    // Predicated region
    $region18: #{cnn_with_clinical_forward.1} parent=1 // pred_check
      _
    $region19: #{cnn_with_clinical_forward.1} parent=1 // pred_check_branch
      %23 = sbr.rel (0) target = $region21
    $region20: #{cnn_with_clinical_forward.1} parent=1 // pred_region
      _
    $region21: #{cnn_with_clinical_forward.1} parent=1 // pred_fallthru
      _
    // Predicated region
    $region22: #{cnn_with_clinical_forward.1} parent=1 // pred_check
      _
    $region23: #{cnn_with_clinical_forward.1} parent=1 // pred_check_branch
      %25 = sbr.rel (0) target = $region25
    $region24: #{cnn_with_clinical_forward.1} parent=1 // pred_region
      _
    $region25: #{cnn_with_clinical_forward.1} parent=1 // pred_fallthru
      _
    // Predicated region
    $region26: #{cnn_with_clinical_forward.1} parent=1 // pred_check
      _
    $region27: #{cnn_with_clinical_forward.1} parent=1 // pred_check_branch
      %27 = sbr.rel (0) target = $region29
    $region28: #{cnn_with_clinical_forward.1} parent=1 // pred_region
      _
    $region29: #{cnn_with_clinical_forward.1} parent=1 // pred_fallthru
      _
    // Predicated region
    $region30: #{cnn_with_clinical_forward.1} parent=1 // pred_check
      _
    $region31: #{cnn_with_clinical_forward.1} parent=1 // pred_check_branch
      %29 = sbr.rel (0) target = $region33
    $region32: #{cnn_with_clinical_forward.1} parent=1 // pred_region
      _
    $region33: #{cnn_with_clinical_forward.1} parent=1 // pred_fallthru
      _
    %v31 = vld [vmem:[%s0] sm:$0xf]
    %v32 = vld [vmem:[%s0 + $0x4] sm:$0xf]
    %v33 = vld [vmem:[%s0 + $0x8] sm:$0xf]
    %v34 = vld [vmem:[%s0 + $0xc] sm:$0xf]
    %v35 = vld [vmem:[%s0 + $0x10] sm:$0x3]
    %v36 = vld [vmem:[%s1] sm:$0xff]
    %v37 = vld [vmem:[%s1 + $0x8] sm:$0xff]
    %v38 = vld [vmem:[%s1 + $0x10] sm:$0xff]
    %v39 = vld [vmem:[%s1 + $0x18] sm:$0xff]
    %v40 = vld [vmem:[%s1 + $0x20] sm:$0xff]
    %v41 = vld [vmem:[%s1 + $0x28] sm:$0xff]
    %v42 = vld [vmem:[%s1 + $0x30] sm:$0xff]
    %v43 = vld [vmem:[%s1 + $0x38] sm:$0xff]
    %v44 = vld [vmem:[%s1 + $0x40] sm:$0xff]
    %v45 = vld [vmem:[%s1 + $0x48] sm:$0xff]
    %v46 = vld [vmem:[%s1 + $0x50] sm:$0xff]
    %v47 = vld [vmem:[%s1 + $0x58] sm:$0xff]
    %v48 = vld [vmem:[%s1 + $0x60] sm:$0xff]
    %v49 = vld [vmem:[%s1 + $0x68] sm:$0xff]
    %v50 = vld [vmem:[%s1 + $0x70] sm:$0xff]
    %v51 = vld [vmem:[%s1 + $0x78] sm:$0xff]
    %v52 = vld [vmem:[%s1 + $0x80] sm:$0xff]
    %v53 = vld [vmem:[%s1 + $0x88] sm:$0xff]
    %s54 = scalar_lea.vmem %s1, 144
    %v55 = vld [vmem:[%s54] sm:$0xff]
    %v56 = vld [vmem:[%s54 + $0x8] sm:$0xff]
    %v57 = vld [vmem:[%s54 + $0x10] sm:$0xff]
    %v58 = vld [vmem:[%s54 + $0x18] sm:$0xff]
    %v59 = vld [vmem:[%s54 + $0x20] sm:$0xff]
    %v60 = vld [vmem:[%s54 + $0x28] sm:$0xff]
    %v61 = vld [vmem:[%s54 + $0x30] sm:$0xff]
    %v62 = vld [vmem:[%s54 + $0x38] sm:$0xff]
    %v63 = vld [vmem:[%s54 + $0x40] sm:$0xff]
    %v64 = vld [vmem:[%s54 + $0x48] sm:$0xff]
    %v65 = vld [vmem:[%s54 + $0x50] sm:$0xff]
    %v66 = vld [vmem:[%s54 + $0x58] sm:$0xff]
    %v67 = vld [vmem:[%s54 + $0x60] sm:$0xff]
    %v68 = vld [vmem:[%s54 + $0x68] sm:$0xff]
    %v69 = vld [vmem:[%s54 + $0x70] sm:$0xff]
    %v70 = vld [vmem:[%s54 + $0x78] sm:$0xff]
    %v71 = vld [vmem:[%s54 + $0x80] sm:$0xff]
    %v72 = vld [vmem:[%s54 + $0x88] sm:$0xff]
    %v78 = vunpack.c.l.b16 %v31
    %v79 = vunpack.c.l.b16 %v32
    %v80 = vunpack.c.l.b16 %v33
    %v81 = vunpack.c.l.b16 %v34
    %v82 = vunpack.c.l.b16 %v35
    %v83 = vpack.c.b16 %v79, %v78
    %v84 = vpack.c.b16 %v81, %v80
    %v85 = vpack.c.b16 %v82, %v82
    %vm86 = vsmask.f32 7424
    %v88 = vshrl.u32 %v83, 16
    %v90 = vshll.u32 %v83, 16
    %v92 = vrot.slane %v90, 1
    %v93 = vor.u32 %v88, %v92
    %v95 = vshll.u32 %v84, 16
    %v97 = vrot.slane %v95, 1
    %v98 = vsel %vm86, %v93, %v97
    %v99 = vshrl.u32 %v84, 16
    %v101 = vor.u32 %v99, %v97
    %v103 = vshll.u32 %v85, 16
    %v105 = vrot.slane %v103, 1
    %v106 = vsel %vm86, %v101, %v105
    %v107 = vshrl.u32 %v85, 16
    %v109 = vor.u32 %v107, %v105
    %v128 = vunpack.c.l.b16 %v55
    %v129 = vunpack.c.h.b16 %v55
    %v130 = vunpack.c.l.b16 %v56
    %v131 = vunpack.c.h.b16 %v56
    %v132 = vunpack.c.l.b16 %v57
    %v133 = vunpack.c.h.b16 %v57
    %v134 = vunpack.c.l.b16 %v58
    %v135 = vunpack.c.h.b16 %v58
    %v136 = vunpack.c.l.b16 %v59
    %v137 = vunpack.c.h.b16 %v59
    %v138 = vunpack.c.l.b16 %v60
    %v139 = vunpack.c.h.b16 %v60
    %v140 = vunpack.c.l.b16 %v61
    %v141 = vunpack.c.h.b16 %v61
    %v142 = vunpack.c.l.b16 %v62
    %v143 = vunpack.c.h.b16 %v62
    %v144 = vunpack.c.l.b16 %v63
    %v145 = vunpack.c.h.b16 %v63
    %v146 = vunpack.c.l.b16 %v64
    %v147 = vunpack.c.h.b16 %v64
    %v148 = vunpack.c.l.b16 %v65
    %v149 = vunpack.c.h.b16 %v65
    %v150 = vunpack.c.l.b16 %v66
    %v151 = vunpack.c.h.b16 %v66
    %v152 = vunpack.c.l.b16 %v67
    %v153 = vunpack.c.h.b16 %v67
    %v154 = vunpack.c.l.b16 %v68
    %v155 = vunpack.c.h.b16 %v68
    %v156 = vunpack.c.l.b16 %v69
    %v157 = vunpack.c.h.b16 %v69
    %v158 = vunpack.c.l.b16 %v70
    %v159 = vunpack.c.h.b16 %v70
    %v160 = vunpack.c.l.b16 %v71
    %v161 = vunpack.c.h.b16 %v71
    %v162 = vunpack.c.l.b16 %v72
    %v163 = vunpack.c.h.b16 %v72
    %v164 = vpack.c.b16 %v132, %v128
    %v165 = vpack.c.b16 %v133, %v129
    %v166 = vpack.c.b16 %v134, %v130
    %v167 = vpack.c.b16 %v135, %v131
    %v168 = vpack.c.b16 %v140, %v136
    %v169 = vpack.c.b16 %v141, %v137
    %v170 = vpack.c.b16 %v142, %v138
    %v171 = vpack.c.b16 %v143, %v139
    %v172 = vpack.c.b16 %v148, %v144
    %v173 = vpack.c.b16 %v149, %v145
    %v174 = vpack.c.b16 %v150, %v146
    %v175 = vpack.c.b16 %v151, %v147
    %v176 = vpack.c.b16 %v156, %v152
    %v177 = vpack.c.b16 %v157, %v153
    %v178 = vpack.c.b16 %v158, %v154
    %v179 = vpack.c.b16 %v159, %v155
    %v180 = vpack.c.b16 %v160, %v160
    %v181 = vpack.c.b16 %v161, %v161
    %v182 = vpack.c.b16 %v162, %v162
    %v183 = vpack.c.b16 %v163, %v163
    %vm200 = vcmask 588800
    %v202 = vsel %vm200, %v98, 0
    %v205 = vsel %vm200, %v106, 0
    %v208 = vsel %vm200, %v109, 0
    %vm210 = vcmask 1043456
    %v212 = vsel %vm210, %v180, 0
    %v215 = vsel %vm210, %v181, 0
    %v218 = vsel %vm210, %v182, 0
    %v221 = vsel %vm210, %v183, 0
    %223 = vmatprep.subr.bf16.mxu0 %v165
    %224 = vmatpush1.bf16.msra.mxu0 %v164
    %225 = vmatprep.subr.bf16.mxu0 %v169
    %226 = vmatpush1.bf16.msra.mxu0 %v168
    %227 = vmatprep.subr.bf16.mxu0 %v173
    %228 = vmatpush1.bf16.msra.mxu0 %v172
    %229 = vmatprep.subr.bf16.mxu0 %v177
    %230 = vmatpush1.bf16.msra.mxu0 %v176
    %231 = vmatprep.subr.bf16.mxu0 %v215
    %232 = vmatpush1.bf16.msra.mxu0 %v212
    %233 = vmatprep.subr.bf16.mxu0 0
    %234 = vmatpush1.bf16.msra.mxu0 0
    %235 = vmatprep.subr.bf16.mxu0 0
    %236 = vmatpush1.bf16.msra.mxu0 0
    %237 = vmatprep.subr.bf16.mxu0 0
    %238 = vmatpush1.bf16.msra.mxu0 0
    %239 = vmatprep.subr.bf16.mxu0 0
    %240 = vmatpush1.bf16.msra.mxu0 0
    %241 = vmatprep.subr.bf16.mxu0 0
    %242 = vmatpush1.bf16.msra.mxu0 0
    %243 = vmatprep.subr.bf16.mxu0 0
    %244 = vmatpush1.bf16.msra.mxu0 0
    %245 = vmatprep.subr.bf16.mxu0 0
    %246 = vmatpush1.bf16.msra.mxu0 0
    %247 = vmatprep.subr.bf16.mxu0 0
    %248 = vmatpush1.bf16.msra.mxu0 0
    %249 = vmatprep.subr.bf16.mxu0 0
    %250 = vmatpush1.bf16.msra.mxu0 0
    %251 = vmatprep.subr.bf16.mxu0 0
    %252 = vmatpush1.bf16.msra.mxu0 0
    %253 = vmatprep.subr.bf16.mxu0 0
    %254 = vmatpush1.bf16.msra.mxu0 0
    %255 = vmatprep.mubr.bf16.mxu0 0
    %256 = vmatmul.mubr.bf16.gmra.mrb[0].mxu0 %v202
    %v257 = vpop.f32.mrb[0].mxu0
    %v258 = vadd.f32 0.0, %v257
    %v259 = vpop.f32.mrb[0].mxu0
    %v260 = vadd.f32 0.0, %v259
    %v261 = vpop.f32.mrb[0].mxu0
    %v262 = vadd.f32 0.0, %v261
    %v263 = vpop.f32.mrb[0].mxu0
    %v264 = vadd.f32 0.0, %v263
    %265 = vmatprep.mubr.bf16.mxu0 0
    %266 = vmatmul.mubr.bf16.gmra.mrb[0].mxu0 %v205
    %v267 = vpop.f32.mrb[0].mxu0
    %v268 = vadd.f32 0.0, %v267
    %v269 = vpop.f32.mrb[0].mxu0
    %v270 = vadd.f32 0.0, %v269
    %v271 = vpop.f32.mrb[0].mxu0
    %v272 = vadd.f32 0.0, %v271
    %v273 = vpop.f32.mrb[0].mxu0
    %v274 = vadd.f32 0.0, %v273
    %275 = vmatprep.mubr.bf16.mxu0 0
    %276 = vmatmul.mubr.bf16.gmra.mrb[0].mxu0 %v208
    %v277 = vpop.f32.mrb[0].mxu0
    %v278 = vadd.f32 0.0, %v277
    %v279 = vpop.f32.mrb[0].mxu0
    %v280 = vadd.f32 0.0, %v279
    %v281 = vpop.f32.mrb[0].mxu0
    %v282 = vpop.f32.mrb[0].mxu0
    %283 = vdwg.mxu0
    %284 = vmatprep.subr.bf16.mxu0 %v167
    %285 = vmatpush1.bf16.msra.mxu0 %v166
    %286 = vmatprep.subr.bf16.mxu0 %v171
    %287 = vmatpush1.bf16.msra.mxu0 %v170
    %288 = vmatprep.subr.bf16.mxu0 %v175
    %289 = vmatpush1.bf16.msra.mxu0 %v174
    %290 = vmatprep.subr.bf16.mxu0 %v179
    %291 = vmatpush1.bf16.msra.mxu0 %v178
    %292 = vmatprep.subr.bf16.mxu0 %v221
    %293 = vmatpush1.bf16.msra.mxu0 %v218
    %294 = vmatprep.subr.bf16.mxu0 0
    %295 = vmatpush1.bf16.msra.mxu0 0
    %296 = vmatprep.subr.bf16.mxu0 0
    %297 = vmatpush1.bf16.msra.mxu0 0
    %298 = vmatprep.subr.bf16.mxu0 0
    %299 = vmatpush1.bf16.msra.mxu0 0
    %300 = vmatprep.subr.bf16.mxu0 0
    %301 = vmatpush1.bf16.msra.mxu0 0
    %302 = vmatprep.subr.bf16.mxu0 0
    %303 = vmatpush1.bf16.msra.mxu0 0
    %304 = vmatprep.subr.bf16.mxu0 0
    %305 = vmatpush1.bf16.msra.mxu0 0
    %306 = vmatprep.subr.bf16.mxu0 0
    %307 = vmatpush1.bf16.msra.mxu0 0
    %308 = vmatprep.subr.bf16.mxu0 0
    %309 = vmatpush1.bf16.msra.mxu0 0
    %310 = vmatprep.subr.bf16.mxu0 0
    %311 = vmatpush1.bf16.msra.mxu0 0
    %312 = vmatprep.subr.bf16.mxu0 0
    %313 = vmatpush1.bf16.msra.mxu0 0
    %314 = vmatprep.subr.bf16.mxu0 0
    %315 = vmatpush1.bf16.msra.mxu0 0
    %316 = vmatprep.mubr.bf16.mxu0 0
    %317 = vmatmul.mubr.bf16.gmra.mrb[0].mxu0 %v202
    %v318 = vpop.f32.mrb[0].mxu0
    %v319 = vadd.f32 0.0, %v318
    %v320 = vpop.f32.mrb[0].mxu0
    %v321 = vadd.f32 0.0, %v320
    %v322 = vpop.f32.mrb[0].mxu0
    %v323 = vadd.f32 0.0, %v322
    %v324 = vpop.f32.mrb[0].mxu0
    %v325 = vadd.f32 0.0, %v324
    %326 = vmatprep.mubr.bf16.mxu0 0
    %327 = vmatmul.mubr.bf16.gmra.mrb[0].mxu0 %v205
    %v328 = vpop.f32.mrb[0].mxu0
    %v329 = vadd.f32 0.0, %v328
    %v330 = vpop.f32.mrb[0].mxu0
    %v331 = vadd.f32 0.0, %v330
    %v332 = vpop.f32.mrb[0].mxu0
    %v333 = vadd.f32 0.0, %v332
    %v334 = vpop.f32.mrb[0].mxu0
    %v335 = vadd.f32 0.0, %v334
    %336 = vmatprep.mubr.bf16.mxu0 0
    %337 = vmatmul.mubr.bf16.gmra.mrb[0].mxu0 %v208
    %v338 = vpop.f32.mrb[0].mxu0
    %v339 = vadd.f32 0.0, %v338
    %v340 = vpop.f32.mrb[0].mxu0
    %v341 = vadd.f32 0.0, %v340
    %v342 = vpop.f32.mrb[0].mxu0
    %v343 = vpop.f32.mrb[0].mxu0
    %344 = vdwg.mxu0
    %v363 = vunpack.c.l.b16 %v36
    %v364 = vunpack.c.h.b16 %v36
    %v365 = vunpack.c.l.b16 %v37
    %v366 = vunpack.c.h.b16 %v37
    %v367 = vunpack.c.l.b16 %v38
    %v368 = vunpack.c.h.b16 %v38
    %v369 = vunpack.c.l.b16 %v39
    %v370 = vunpack.c.h.b16 %v39
    %v371 = vunpack.c.l.b16 %v40
    %v372 = vunpack.c.h.b16 %v40
    %v373 = vunpack.c.l.b16 %v41
    %v374 = vunpack.c.h.b16 %v41
    %v375 = vunpack.c.l.b16 %v42
    %v376 = vunpack.c.h.b16 %v42
    %v377 = vunpack.c.l.b16 %v43
    %v378 = vunpack.c.h.b16 %v43
    %v379 = vunpack.c.l.b16 %v44
    %v380 = vunpack.c.h.b16 %v44
    %v381 = vunpack.c.l.b16 %v45
    %v382 = vunpack.c.h.b16 %v45
    %v383 = vunpack.c.l.b16 %v46
    %v384 = vunpack.c.h.b16 %v46
    %v385 = vunpack.c.l.b16 %v47
    %v386 = vunpack.c.h.b16 %v47
    %v387 = vunpack.c.l.b16 %v48
    %v388 = vunpack.c.h.b16 %v48
    %v389 = vunpack.c.l.b16 %v49
    %v390 = vunpack.c.h.b16 %v49
    %v391 = vunpack.c.l.b16 %v50
    %v392 = vunpack.c.h.b16 %v50
    %v393 = vunpack.c.l.b16 %v51
    %v394 = vunpack.c.h.b16 %v51
    %v395 = vunpack.c.l.b16 %v52
    %v396 = vunpack.c.h.b16 %v52
    %v397 = vunpack.c.l.b16 %v53
    %v398 = vunpack.c.h.b16 %v53
    %v399 = vpack.c.b16 %v367, %v363
    %v400 = vpack.c.b16 %v368, %v364
    %v401 = vpack.c.b16 %v369, %v365
    %v402 = vpack.c.b16 %v370, %v366
    %v403 = vpack.c.b16 %v375, %v371
    %v404 = vpack.c.b16 %v376, %v372
    %v405 = vpack.c.b16 %v377, %v373
    %v406 = vpack.c.b16 %v378, %v374
    %v407 = vpack.c.b16 %v383, %v379
    %v408 = vpack.c.b16 %v384, %v380
    %v409 = vpack.c.b16 %v385, %v381
    %v410 = vpack.c.b16 %v386, %v382
    %v411 = vpack.c.b16 %v391, %v387
    %v412 = vpack.c.b16 %v392, %v388
    %v413 = vpack.c.b16 %v393, %v389
    %v414 = vpack.c.b16 %v394, %v390
    %v415 = vpack.c.b16 %v395, %v395
    %v416 = vpack.c.b16 %v396, %v396
    %v417 = vpack.c.b16 %v397, %v397
    %v418 = vpack.c.b16 %v398, %v398
    %v435 = vsel %vm200, %v83, 0
    %v437 = vsel %vm200, %v84, 0
    %v439 = vsel %vm200, %v85, 0
    %v442 = vsel %vm210, %v415, 0
    %v445 = vsel %vm210, %v416, 0
    %v448 = vsel %vm210, %v417, 0
    %v451 = vsel %vm210, %v418, 0
    %453 = vmatprep.subr.bf16.mxu0 %v400
    %454 = vmatpush1.bf16.msra.mxu0 %v399
    %455 = vmatprep.subr.bf16.mxu0 %v404
    %456 = vmatpush1.bf16.msra.mxu0 %v403
    %457 = vmatprep.subr.bf16.mxu0 %v408
    %458 = vmatpush1.bf16.msra.mxu0 %v407
    %459 = vmatprep.subr.bf16.mxu0 %v412
    %460 = vmatpush1.bf16.msra.mxu0 %v411
    %461 = vmatprep.subr.bf16.mxu0 %v445
    %462 = vmatpush1.bf16.msra.mxu0 %v442
    %463 = vmatprep.subr.bf16.mxu0 0
    %464 = vmatpush1.bf16.msra.mxu0 0
    %465 = vmatprep.subr.bf16.mxu0 0
    %466 = vmatpush1.bf16.msra.mxu0 0
    %467 = vmatprep.subr.bf16.mxu0 0
    %468 = vmatpush1.bf16.msra.mxu0 0
    %469 = vmatprep.subr.bf16.mxu0 0
    %470 = vmatpush1.bf16.msra.mxu0 0
    %471 = vmatprep.subr.bf16.mxu0 0
    %472 = vmatpush1.bf16.msra.mxu0 0
    %473 = vmatprep.subr.bf16.mxu0 0
    %474 = vmatpush1.bf16.msra.mxu0 0
    %475 = vmatprep.subr.bf16.mxu0 0
    %476 = vmatpush1.bf16.msra.mxu0 0
    %477 = vmatprep.subr.bf16.mxu0 0
    %478 = vmatpush1.bf16.msra.mxu0 0
    %479 = vmatprep.subr.bf16.mxu0 0
    %480 = vmatpush1.bf16.msra.mxu0 0
    %481 = vmatprep.subr.bf16.mxu0 0
    %482 = vmatpush1.bf16.msra.mxu0 0
    %483 = vmatprep.subr.bf16.mxu0 0
    %484 = vmatpush1.bf16.msra.mxu0 0
    %485 = vmatprep.mubr.bf16.mxu0 0
    %486 = vmatmul.mubr.bf16.gmra.mrb[0].mxu0 %v435
    %v487 = vpop.f32.mrb[0].mxu0
    %v488 = vadd.f32 %v258, %v487
    %v489 = vpop.f32.mrb[0].mxu0
    %v490 = vadd.f32 %v260, %v489
    %v491 = vpop.f32.mrb[0].mxu0
    %v492 = vadd.f32 %v262, %v491
    %v493 = vpop.f32.mrb[0].mxu0
    %v494 = vadd.f32 %v264, %v493
    %495 = vmatprep.mubr.bf16.mxu0 0
    %496 = vmatmul.mubr.bf16.gmra.mrb[0].mxu0 %v437
    %v497 = vpop.f32.mrb[0].mxu0
    %v498 = vadd.f32 %v268, %v497
    %v499 = vpop.f32.mrb[0].mxu0
    %v500 = vadd.f32 %v270, %v499
    %v501 = vpop.f32.mrb[0].mxu0
    %v502 = vadd.f32 %v272, %v501
    %v503 = vpop.f32.mrb[0].mxu0
    %v504 = vadd.f32 %v274, %v503
    %505 = vmatprep.mubr.bf16.mxu0 0
    %506 = vmatmul.mubr.bf16.gmra.mrb[0].mxu0 %v439
    %v507 = vpop.f32.mrb[0].mxu0
    %v508 = vadd.f32 %v278, %v507
    %v509 = vpop.f32.mrb[0].mxu0
    %v510 = vadd.f32 %v280, %v509
    %v511 = vpop.f32.mrb[0].mxu0
    %v512 = vpop.f32.mrb[0].mxu0
    %513 = vdwg.mxu0
    %514 = vmatprep.subr.bf16.mxu0 %v402
    %515 = vmatpush1.bf16.msra.mxu0 %v401
    %516 = vmatprep.subr.bf16.mxu0 %v406
    %517 = vmatpush1.bf16.msra.mxu0 %v405
    %518 = vmatprep.subr.bf16.mxu0 %v410
    %519 = vmatpush1.bf16.msra.mxu0 %v409
    %520 = vmatprep.subr.bf16.mxu0 %v414
    %521 = vmatpush1.bf16.msra.mxu0 %v413
    %522 = vmatprep.subr.bf16.mxu0 %v451
    %523 = vmatpush1.bf16.msra.mxu0 %v448
    %524 = vmatprep.subr.bf16.mxu0 0
    %525 = vmatpush1.bf16.msra.mxu0 0
    %526 = vmatprep.subr.bf16.mxu0 0
    %527 = vmatpush1.bf16.msra.mxu0 0
    %528 = vmatprep.subr.bf16.mxu0 0
    %529 = vmatpush1.bf16.msra.mxu0 0
    %530 = vmatprep.subr.bf16.mxu0 0
    %531 = vmatpush1.bf16.msra.mxu0 0
    %532 = vmatprep.subr.bf16.mxu0 0
    %533 = vmatpush1.bf16.msra.mxu0 0
    %534 = vmatprep.subr.bf16.mxu0 0
    %535 = vmatpush1.bf16.msra.mxu0 0
    %536 = vmatprep.subr.bf16.mxu0 0
    %537 = vmatpush1.bf16.msra.mxu0 0
    %538 = vmatprep.subr.bf16.mxu0 0
    %539 = vmatpush1.bf16.msra.mxu0 0
    %540 = vmatprep.subr.bf16.mxu0 0
    %541 = vmatpush1.bf16.msra.mxu0 0
    %542 = vmatprep.subr.bf16.mxu0 0
    %543 = vmatpush1.bf16.msra.mxu0 0
    %544 = vmatprep.subr.bf16.mxu0 0
    %545 = vmatpush1.bf16.msra.mxu0 0
    %546 = vmatprep.mubr.bf16.mxu0 0
    %547 = vmatmul.mubr.bf16.gmra.mrb[0].mxu0 %v435
    %v548 = vpop.f32.mrb[0].mxu0
    %v549 = vadd.f32 %v319, %v548
    %v550 = vpop.f32.mrb[0].mxu0
    %v551 = vadd.f32 %v321, %v550
    %v552 = vpop.f32.mrb[0].mxu0
    %v553 = vadd.f32 %v323, %v552
    %v554 = vpop.f32.mrb[0].mxu0
    %v555 = vadd.f32 %v325, %v554
    %556 = vmatprep.mubr.bf16.mxu0 0
    %557 = vmatmul.mubr.bf16.gmra.mrb[0].mxu0 %v437
    %v558 = vpop.f32.mrb[0].mxu0
    %v559 = vadd.f32 %v329, %v558
    %v560 = vpop.f32.mrb[0].mxu0
    %v561 = vadd.f32 %v331, %v560
    %v562 = vpop.f32.mrb[0].mxu0
    %v563 = vadd.f32 %v333, %v562
    %v564 = vpop.f32.mrb[0].mxu0
    %v565 = vadd.f32 %v335, %v564
    %566 = vmatprep.mubr.bf16.mxu0 0
    %567 = vmatmul.mubr.bf16.gmra.mrb[0].mxu0 %v439
    %v568 = vpop.f32.mrb[0].mxu0
    %v569 = vadd.f32 %v339, %v568
    %v570 = vpop.f32.mrb[0].mxu0
    %v571 = vadd.f32 %v341, %v570
    %v572 = vpop.f32.mrb[0].mxu0
    %v573 = vpop.f32.mrb[0].mxu0
    %574 = vdwg.mxu0
    %s575 = scalar_lea.vmem %s1, 288
    %v576 = vld [vmem:[%s575] sm:$0xff]
    %v577 = vld [vmem:[%s575 + $0x8] sm:$0xff]
    %v578 = vld [vmem:[%s575 + $0x10] sm:$0xff]
    %v579 = vld [vmem:[%s575 + $0x18] sm:$0xff]
    %v580 = vld [vmem:[%s575 + $0x20] sm:$0xff]
    %v581 = vld [vmem:[%s575 + $0x28] sm:$0xff]
    %v582 = vld [vmem:[%s575 + $0x30] sm:$0xff]
    %v583 = vld [vmem:[%s575 + $0x38] sm:$0xff]
    %v584 = vld [vmem:[%s575 + $0x40] sm:$0xff]
    %v585 = vld [vmem:[%s575 + $0x48] sm:$0xff]
    %v586 = vld [vmem:[%s575 + $0x50] sm:$0xff]
    %v587 = vld [vmem:[%s575 + $0x58] sm:$0xff]
    %v588 = vld [vmem:[%s575 + $0x60] sm:$0xff]
    %v589 = vld [vmem:[%s575 + $0x68] sm:$0xff]
    %v590 = vld [vmem:[%s575 + $0x70] sm:$0xff]
    %v591 = vld [vmem:[%s575 + $0x78] sm:$0xff]
    %v592 = vld [vmem:[%s575 + $0x80] sm:$0xff]
    %v593 = vld [vmem:[%s575 + $0x88] sm:$0xff]
    %vm594 = vcmask 1046528
    %v595 = vrot.slane %v83, 1
    %v596 = vrot.slane %v84, 1
    %v597 = vsel %vm594, %v595, %v596
    %v598 = vrot.slane %v85, 1
    %v599 = vsel %vm594, %v596, %v598
    %v618 = vunpack.c.l.b16 %v576
    %v619 = vunpack.c.h.b16 %v576
    %v620 = vunpack.c.l.b16 %v577
    %v621 = vunpack.c.h.b16 %v577
    %v622 = vunpack.c.l.b16 %v578
    %v623 = vunpack.c.h.b16 %v578
    %v624 = vunpack.c.l.b16 %v579
    %v625 = vunpack.c.h.b16 %v579
    %v626 = vunpack.c.l.b16 %v580
    %v627 = vunpack.c.h.b16 %v580
    %v628 = vunpack.c.l.b16 %v581
    %v629 = vunpack.c.h.b16 %v581
    %v630 = vunpack.c.l.b16 %v582
    %v631 = vunpack.c.h.b16 %v582
    %v632 = vunpack.c.l.b16 %v583
    %v633 = vunpack.c.h.b16 %v583
    %v634 = vunpack.c.l.b16 %v584
    %v635 = vunpack.c.h.b16 %v584
    %v636 = vunpack.c.l.b16 %v585
    %v637 = vunpack.c.h.b16 %v585
    %v638 = vunpack.c.l.b16 %v586
    %v639 = vunpack.c.h.b16 %v586
    %v640 = vunpack.c.l.b16 %v587
    %v641 = vunpack.c.h.b16 %v587
    %v642 = vunpack.c.l.b16 %v588
    %v643 = vunpack.c.h.b16 %v588
    %v644 = vunpack.c.l.b16 %v589
    %v645 = vunpack.c.h.b16 %v589
    %v646 = vunpack.c.l.b16 %v590
    %v647 = vunpack.c.h.b16 %v590
    %v648 = vunpack.c.l.b16 %v591
    %v649 = vunpack.c.h.b16 %v591
    %v650 = vunpack.c.l.b16 %v592
    %v651 = vunpack.c.h.b16 %v592
    %v652 = vunpack.c.l.b16 %v593
    %v653 = vunpack.c.h.b16 %v593
    %v654 = vpack.c.b16 %v622, %v618
    %v655 = vpack.c.b16 %v623, %v619
    %v656 = vpack.c.b16 %v624, %v620
    %v657 = vpack.c.b16 %v625, %v621
    %v658 = vpack.c.b16 %v630, %v626
    %v659 = vpack.c.b16 %v631, %v627
    %v660 = vpack.c.b16 %v632, %v628
    %v661 = vpack.c.b16 %v633, %v629
    %v662 = vpack.c.b16 %v638, %v634
    %v663 = vpack.c.b16 %v639, %v635
    %v664 = vpack.c.b16 %v640, %v636
    %v665 = vpack.c.b16 %v641, %v637
    %v666 = vpack.c.b16 %v646, %v642
    %v667 = vpack.c.b16 %v647, %v643
    %v668 = vpack.c.b16 %v648, %v644
    %v669 = vpack.c.b16 %v649, %v645
    %v670 = vpack.c.b16 %v650, %v650
    %v671 = vpack.c.b16 %v651, %v651
    %v672 = vpack.c.b16 %v652, %v652
    %v673 = vpack.c.b16 %v653, %v653
    %v691 = vsel %vm200, %v597, 0
    %v694 = vsel %vm200, %v599, 0
    %v697 = vsel %vm200, %v598, 0
    %v700 = vsel %vm210, %v670, 0
    %v703 = vsel %vm210, %v671, 0
    %v706 = vsel %vm210, %v672, 0
    %v709 = vsel %vm210, %v673, 0
    %711 = vmatprep.subr.bf16.mxu0 %v655
    %712 = vmatpush1.bf16.msra.mxu0 %v654
    %713 = vmatprep.subr.bf16.mxu0 %v659
    %714 = vmatpush1.bf16.msra.mxu0 %v658
    %715 = vmatprep.subr.bf16.mxu0 %v663
    %716 = vmatpush1.bf16.msra.mxu0 %v662
    %717 = vmatprep.subr.bf16.mxu0 %v667
    %718 = vmatpush1.bf16.msra.mxu0 %v666
    %719 = vmatprep.subr.bf16.mxu0 %v703
    %720 = vmatpush1.bf16.msra.mxu0 %v700
    %721 = vmatprep.subr.bf16.mxu0 0
    %722 = vmatpush1.bf16.msra.mxu0 0
    %723 = vmatprep.subr.bf16.mxu0 0
    %724 = vmatpush1.bf16.msra.mxu0 0
    %725 = vmatprep.subr.bf16.mxu0 0
    %726 = vmatpush1.bf16.msra.mxu0 0
    %727 = vmatprep.subr.bf16.mxu0 0
    %728 = vmatpush1.bf16.msra.mxu0 0
    %729 = vmatprep.subr.bf16.mxu0 0
    %730 = vmatpush1.bf16.msra.mxu0 0
    %731 = vmatprep.subr.bf16.mxu0 0
    %732 = vmatpush1.bf16.msra.mxu0 0
    %733 = vmatprep.subr.bf16.mxu0 0
    %734 = vmatpush1.bf16.msra.mxu0 0
    %735 = vmatprep.subr.bf16.mxu0 0
    %736 = vmatpush1.bf16.msra.mxu0 0
    %737 = vmatprep.subr.bf16.mxu0 0
    %738 = vmatpush1.bf16.msra.mxu0 0
    %739 = vmatprep.subr.bf16.mxu0 0
    %740 = vmatpush1.bf16.msra.mxu0 0
    %741 = vmatprep.subr.bf16.mxu0 0
    %742 = vmatpush1.bf16.msra.mxu0 0
    %743 = vmatprep.mubr.bf16.mxu0 0
    %744 = vmatmul.mubr.bf16.gmra.mrb[0].mxu0 %v691
    %v745 = vpop.f32.mrb[0].mxu0
    %v746 = vadd.f32 0.0, %v745
    %v747 = vpop.f32.mrb[0].mxu0
    %v748 = vadd.f32 0.0, %v747
    %v749 = vpop.f32.mrb[0].mxu0
    %v750 = vadd.f32 0.0, %v749
    %v751 = vpop.f32.mrb[0].mxu0
    %v752 = vadd.f32 0.0, %v751
    %753 = vmatprep.mubr.bf16.mxu0 0
    %754 = vmatmul.mubr.bf16.gmra.mrb[0].mxu0 %v694
    %v755 = vpop.f32.mrb[0].mxu0
    %v756 = vadd.f32 0.0, %v755
    %v757 = vpop.f32.mrb[0].mxu0
    %v758 = vadd.f32 0.0, %v757
    %v759 = vpop.f32.mrb[0].mxu0
    %v760 = vadd.f32 0.0, %v759
    %v761 = vpop.f32.mrb[0].mxu0
    %v762 = vadd.f32 0.0, %v761
    %763 = vmatprep.mubr.bf16.mxu0 0
    %764 = vmatmul.mubr.bf16.gmra.mrb[0].mxu0 %v697
    %v765 = vpop.f32.mrb[0].mxu0
    %v766 = vadd.f32 0.0, %v765
    %v767 = vpop.f32.mrb[0].mxu0
    %v768 = vadd.f32 0.0, %v767
    %v769 = vpop.f32.mrb[0].mxu0
    %v770 = vpop.f32.mrb[0].mxu0
    %771 = vdwg.mxu0
    %772 = vmatprep.subr.bf16.mxu0 %v657
    %773 = vmatpush1.bf16.msra.mxu0 %v656
    %774 = vmatprep.subr.bf16.mxu0 %v661
    %775 = vmatpush1.bf16.msra.mxu0 %v660
    %776 = vmatprep.subr.bf16.mxu0 %v665
    %777 = vmatpush1.bf16.msra.mxu0 %v664
    %778 = vmatprep.subr.bf16.mxu0 %v669
    %779 = vmatpush1.bf16.msra.mxu0 %v668
    %780 = vmatprep.subr.bf16.mxu0 %v709
    %781 = vmatpush1.bf16.msra.mxu0 %v706
    %782 = vmatprep.subr.bf16.mxu0 0
    %783 = vmatpush1.bf16.msra.mxu0 0
    %784 = vmatprep.subr.bf16.mxu0 0
    %785 = vmatpush1.bf16.msra.mxu0 0
    %786 = vmatprep.subr.bf16.mxu0 0
    %787 = vmatpush1.bf16.msra.mxu0 0
    %788 = vmatprep.subr.bf16.mxu0 0
    %789 = vmatpush1.bf16.msra.mxu0 0
    %790 = vmatprep.subr.bf16.mxu0 0
    %791 = vmatpush1.bf16.msra.mxu0 0
    %792 = vmatprep.subr.bf16.mxu0 0
    %793 = vmatpush1.bf16.msra.mxu0 0
    %794 = vmatprep.subr.bf16.mxu0 0
    %795 = vmatpush1.bf16.msra.mxu0 0
    %796 = vmatprep.subr.bf16.mxu0 0
    %797 = vmatpush1.bf16.msra.mxu0 0
    %798 = vmatprep.subr.bf16.mxu0 0
    %799 = vmatpush1.bf16.msra.mxu0 0
    %800 = vmatprep.subr.bf16.mxu0 0
    %801 = vmatpush1.bf16.msra.mxu0 0
    %802 = vmatprep.subr.bf16.mxu0 0
    %803 = vmatpush1.bf16.msra.mxu0 0
    %804 = vmatprep.mubr.bf16.mxu0 0
    %805 = vmatmul.mubr.bf16.gmra.mrb[0].mxu0 %v691
    %v806 = vpop.f32.mrb[0].mxu0
    %v807 = vadd.f32 0.0, %v806
    %v808 = vpop.f32.mrb[0].mxu0
    %v809 = vadd.f32 0.0, %v808
    %v810 = vpop.f32.mrb[0].mxu0
    %v811 = vadd.f32 0.0, %v810
    %v812 = vpop.f32.mrb[0].mxu0
    %v813 = vadd.f32 0.0, %v812
    %814 = vmatprep.mubr.bf16.mxu0 0
    %815 = vmatmul.mubr.bf16.gmra.mrb[0].mxu0 %v694
    %v816 = vpop.f32.mrb[0].mxu0
    %v817 = vadd.f32 0.0, %v816
    %v818 = vpop.f32.mrb[0].mxu0
    %v819 = vadd.f32 0.0, %v818
    %v820 = vpop.f32.mrb[0].mxu0
    %v821 = vadd.f32 0.0, %v820
    %v822 = vpop.f32.mrb[0].mxu0
    %v823 = vadd.f32 0.0, %v822
    %824 = vmatprep.mubr.bf16.mxu0 0
    %825 = vmatmul.mubr.bf16.gmra.mrb[0].mxu0 %v697
    %v826 = vpop.f32.mrb[0].mxu0
    %v827 = vadd.f32 0.0, %v826
    %v828 = vpop.f32.mrb[0].mxu0
    %v829 = vadd.f32 0.0, %v828
    %v830 = vpop.f32.mrb[0].mxu0
    %v831 = vpop.f32.mrb[0].mxu0
    %832 = vdwg.mxu0
    %v833 = vadd.f32 %v488, %v746
    %v834 = vadd.f32 %v490, %v748
    %v835 = vadd.f32 %v549, %v807
    %v836 = vadd.f32 %v551, %v809
    %v837 = vadd.f32 %v492, %v750
    %v838 = vadd.f32 %v494, %v752
    %v839 = vadd.f32 %v553, %v811
    %v840 = vadd.f32 %v555, %v813
    %v841 = vadd.f32 %v498, %v756
    %v842 = vadd.f32 %v500, %v758
    %v843 = vadd.f32 %v559, %v817
    %v844 = vadd.f32 %v561, %v819
    %v845 = vadd.f32 %v502, %v760
    %v846 = vadd.f32 %v504, %v762
    %v847 = vadd.f32 %v563, %v821
    %v848 = vadd.f32 %v565, %v823
    %v849 = vadd.f32 %v508, %v766
    %v850 = vadd.f32 %v510, %v768
    %v851 = vadd.f32 %v569, %v827
    %v852 = vadd.f32 %v571, %v829
    %v853 = vld [vmem:[%s6] ss:$4 sm:$0xf]
    %v855 = vlaneseq
    %v856 = vshrl.u32 %v855, 7
    %v857 = vsub.s32 0, %v856
    %v858 = vrot.slane %v853, %v857
    %v859 = vlaneseq
    %v860 = vshrl.u32 %v859, 7
    %v861 = vsub.s32 1, %v860
    %v862 = vrot.slane %v853, %v861
    %v863 = vlaneseq
    %v864 = vshrl.u32 %v863, 7
    %v865 = vsub.s32 2, %v864
    %v866 = vrot.slane %v853, %v865
    %v867 = vlaneseq
    %v868 = vshrl.u32 %v867, 7
    %v869 = vsub.s32 3, %v868
    %v870 = vrot.slane %v853, %v869
    %v875 = vadd.f32 %v833, %v858
    %v876 = vadd.f32 %v834, %v862
    %v877 = vadd.f32 %v835, %v866
    %v878 = vadd.f32 %v836, %v870
    %v879 = vadd.f32 %v837, %v858
    %v880 = vadd.f32 %v838, %v862
    %v881 = vadd.f32 %v839, %v866
    %v882 = vadd.f32 %v840, %v870
    %v883 = vadd.f32 %v841, %v858
    %v884 = vadd.f32 %v842, %v862
    %v885 = vadd.f32 %v843, %v866
    %v886 = vadd.f32 %v844, %v870
    %v887 = vadd.f32 %v845, %v858
    %v888 = vadd.f32 %v846, %v862
    %v889 = vadd.f32 %v847, %v866
    %v890 = vadd.f32 %v848, %v870
    %v891 = vadd.f32 %v849, %v858
    %v892 = vadd.f32 %v850, %v862
    %v893 = vadd.f32 %v851, %v866
    %v894 = vadd.f32 %v852, %v870
    %v895 = vmax.f32 %v875, 0.0
    %v896 = vmax.f32 %v876, 0.0
    %v897 = vmax.f32 %v877, 0.0
    %v898 = vmax.f32 %v878, 0.0
    %v899 = vmax.f32 %v879, 0.0
    %v900 = vmax.f32 %v880, 0.0
    %v901 = vmax.f32 %v881, 0.0
    %v902 = vmax.f32 %v882, 0.0
    %v903 = vmax.f32 %v883, 0.0
    %v904 = vmax.f32 %v884, 0.0
    %v905 = vmax.f32 %v885, 0.0
    %v906 = vmax.f32 %v886, 0.0
    %v907 = vmax.f32 %v887, 0.0
    %v908 = vmax.f32 %v888, 0.0
    %v909 = vmax.f32 %v889, 0.0
    %v910 = vmax.f32 %v890, 0.0
    %v911 = vmax.f32 %v891, 0.0
    %v912 = vmax.f32 %v892, 0.0
    %v913 = vmax.f32 %v893, 0.0
    %v914 = vmax.f32 %v894, 0.0
    %v915 = vadd.f32 %v895, %v899
    %v916 = vrot.slane %v915, 4
    %v917 = vadd.f32 %v915, %v916
    %v918 = vrot.slane %v917, 2
    %v919 = vadd.f32 %v917, %v918
    %v920 = vrot.slane %v919, 1
    %v921 = vadd.f32 %v919, %v920
    %v922 = vadd.f32 %v896, %v900
    %v923 = vrot.slane %v922, 4
    %v924 = vadd.f32 %v922, %v923
    %v925 = vrot.slane %v924, 2
    %v926 = vadd.f32 %v924, %v925
    %v927 = vrot.slane %v926, 1
    %v928 = vadd.f32 %v926, %v927
    %v929 = vadd.f32 %v897, %v901
    %v930 = vrot.slane %v929, 4
    %v931 = vadd.f32 %v929, %v930
    %v932 = vrot.slane %v931, 2
    %v933 = vadd.f32 %v931, %v932
    %v934 = vrot.slane %v933, 1
    %v935 = vadd.f32 %v933, %v934
    %v936 = vadd.f32 %v898, %v902
    %v937 = vrot.slane %v936, 4
    %v938 = vadd.f32 %v936, %v937
    %v939 = vrot.slane %v938, 2
    %v940 = vadd.f32 %v938, %v939
    %v941 = vrot.slane %v940, 1
    %v942 = vadd.f32 %v940, %v941
    %v943 = vrcp.pop 16.0
    %v944 = vmul.f32 %v921, %v943
    %v945 = vmul.f32 %v928, %v943
    %v946 = vmul.f32 %v935, %v943
    %v947 = vmul.f32 %v942, %v943
    %vm960 = vcmask 1045504
    %v961 = vrot.slane %v903, 2
    %v962 = vrot.slane %v907, 2
    %v963 = vsel %vm960, %v961, %v962
    %v964 = vrot.slane %v904, 2
    %v965 = vrot.slane %v908, 2
    %v966 = vsel %vm960, %v964, %v965
    %v967 = vrot.slane %v905, 2
    %v968 = vrot.slane %v909, 2
    %v969 = vsel %vm960, %v967, %v968
    %v970 = vrot.slane %v906, 2
    %v971 = vrot.slane %v910, 2
    %v972 = vsel %vm960, %v970, %v971
    %v973 = vrot.slane %v911, 2
    %v974 = vsel %vm960, %v962, %v973
    %v975 = vrot.slane %v912, 2
    %v976 = vsel %vm960, %v965, %v975
    %v977 = vrot.slane %v913, 2
    %v978 = vsel %vm960, %v968, %v977
    %v979 = vrot.slane %v914, 2
    %v980 = vsel %vm960, %v971, %v979
    %v989 = vadd.f32 %v963, %v974
    %v990 = vrot.slane %v989, 4
    %v991 = vadd.f32 %v989, %v990
    %v992 = vrot.slane %v991, 2
    %v993 = vadd.f32 %v991, %v992
    %v994 = vrot.slane %v993, 1
    %v995 = vadd.f32 %v993, %v994
    %v996 = vadd.f32 %v966, %v976
    %v997 = vrot.slane %v996, 4
    %v998 = vadd.f32 %v996, %v997
    %v999 = vrot.slane %v998, 2
    %v1000 = vadd.f32 %v998, %v999
    %v1001 = vrot.slane %v1000, 1
    %v1002 = vadd.f32 %v1000, %v1001
    %v1003 = vadd.f32 %v969, %v978
    %v1004 = vrot.slane %v1003, 4
    %v1005 = vadd.f32 %v1003, %v1004
    %v1006 = vrot.slane %v1005, 2
    %v1007 = vadd.f32 %v1005, %v1006
    %v1008 = vrot.slane %v1007, 1
    %v1009 = vadd.f32 %v1007, %v1008
    %v1010 = vadd.f32 %v972, %v980
    %v1011 = vrot.slane %v1010, 4
    %v1012 = vadd.f32 %v1010, %v1011
    %v1013 = vrot.slane %v1012, 2
    %v1014 = vadd.f32 %v1012, %v1013
    %v1015 = vrot.slane %v1014, 1
    %v1016 = vadd.f32 %v1014, %v1015
    %v1017 = vmul.f32 %v995, %v943
    %v1018 = vmul.f32 %v1002, %v943
    %v1019 = vmul.f32 %v1009, %v943
    %v1020 = vmul.f32 %v1016, %v943
    %vm1021 = vcmask 1040384
    %v1022 = vsel %vm1021, %v944, %v1017
    %v1023 = vsel %vm1021, %v945, %v1018
    %v1024 = vsel %vm1021, %v946, %v1019
    %v1025 = vsel %vm1021, %v947, %v1020
    %v1026 = vld [vmem:[%s2] sm:$0xff]
    %v1027 = vld [vmem:[%s2 + $0x8] sm:$0xff]
    %v1028 = vld [vmem:[%s2 + $0x10] sm:$0xff]
    %v1029 = vld [vmem:[%s2 + $0x18] sm:$0xff]
    %v1030 = vld [vmem:[%s2 + $0x20] sm:$0xff]
    %v1031 = vld [vmem:[%s2 + $0x28] sm:$0xff]
    %v1032 = vld [vmem:[%s2 + $0x30] sm:$0xff]
    %v1033 = vld [vmem:[%s2 + $0x38] sm:$0xff]
    %v1034 = vld [vmem:[%s2 + $0x40] sm:$0xff]
    %v1035 = vld [vmem:[%s2 + $0x48] sm:$0xff]
    %v1036 = vld [vmem:[%s2 + $0x50] sm:$0xff]
    %v1037 = vld [vmem:[%s2 + $0x58] sm:$0xff]
    %v1038 = vld [vmem:[%s2 + $0x60] sm:$0xff]
    %v1039 = vld [vmem:[%s2 + $0x68] sm:$0xff]
    %v1040 = vld [vmem:[%s2 + $0x70] sm:$0xff]
    %v1041 = vld [vmem:[%s2 + $0x78] sm:$0xff]
    %v1042 = vld [vmem:[%s2 + $0x80] sm:$0xff]
    %v1043 = vld [vmem:[%s2 + $0x88] sm:$0xff]
    %v1044 = vld [vmem:[%s2 + $0x90] sm:$0xff]
    %v1045 = vld [vmem:[%s2 + $0x98] sm:$0xff]
    %v1046 = vld [vmem:[%s2 + $0xa0] sm:$0xff]
    %v1047 = vld [vmem:[%s2 + $0xa8] sm:$0xff]
    %v1048 = vld [vmem:[%s2 + $0xb0] sm:$0xff]
    %v1049 = vld [vmem:[%s2 + $0xb8] sm:$0xff]
    %v1050 = vld [vmem:[%s2 + $0xc0] sm:$0xff]
    %v1051 = vld [vmem:[%s2 + $0xc8] sm:$0xff]
    %v1052 = vld [vmem:[%s2 + $0xd0] sm:$0xff]
    %v1053 = vld [vmem:[%s2 + $0xd8] sm:$0xff]
    %v1054 = vld [vmem:[%s2 + $0xe0] sm:$0xff]
    %v1055 = vld [vmem:[%s2 + $0xe8] sm:$0xff]
    %v1056 = vld [vmem:[%s2 + $0xf0] sm:$0xff]
    %v1057 = vld [vmem:[%s2 + $0xf8] sm:$0xff]
    %v1058 = vld [vmem:[%s2 + $0x100] sm:$0xff]
    %v1059 = vld [vmem:[%s2 + $0x108] sm:$0xff]
    %v1060 = vld [vmem:[%s2 + $0x110] sm:$0xff]
    %v1061 = vld [vmem:[%s2 + $0x118] sm:$0xff]
    %v1062 = vld [vmem:[%s2 + $0x120] sm:$0xff]
    %v1063 = vld [vmem:[%s2 + $0x128] sm:$0xff]
    %v1064 = vld [vmem:[%s2 + $0x130] sm:$0xff]
    %v1065 = vld [vmem:[%s2 + $0x138] sm:$0xff]
    %v1066 = vld [vmem:[%s2 + $0x140] sm:$0xff]
    %v1067 = vld [vmem:[%s2 + $0x148] sm:$0xff]
    %v1068 = vld [vmem:[%s2 + $0x150] sm:$0xff]
    %v1069 = vld [vmem:[%s2 + $0x158] sm:$0xff]
    %v1070 = vld [vmem:[%s2 + $0x160] sm:$0xff]
    %v1071 = vld [vmem:[%s2 + $0x168] sm:$0xff]
    %v1072 = vld [vmem:[%s2 + $0x170] sm:$0xff]
    %v1073 = vld [vmem:[%s2 + $0x178] sm:$0xff]
    %v1074 = vld [vmem:[%s2 + $0x180] sm:$0xff]
    %v1075 = vld [vmem:[%s2 + $0x188] sm:$0xff]
    %v1076 = vld [vmem:[%s2 + $0x190] sm:$0xff]
    %v1077 = vld [vmem:[%s2 + $0x198] sm:$0xff]
    %v1078 = vld [vmem:[%s2 + $0x1a0] sm:$0xff]
    %v1079 = vld [vmem:[%s2 + $0x1a8] sm:$0xff]
    %v1080 = vld [vmem:[%s2 + $0x1b0] sm:$0xff]
    %v1081 = vld [vmem:[%s2 + $0x1b8] sm:$0xff]
    %v1082 = vld [vmem:[%s2 + $0x1c0] sm:$0xff]
    %v1083 = vld [vmem:[%s2 + $0x1c8] sm:$0xff]
    %v1084 = vld [vmem:[%s2 + $0x1d0] sm:$0xff]
    %v1085 = vld [vmem:[%s2 + $0x1d8] sm:$0xff]
    %v1086 = vld [vmem:[%s2 + $0x1e0] sm:$0xff]
    %v1087 = vld [vmem:[%s2 + $0x1e8] sm:$0xff]
    %v1088 = vld [vmem:[%s2 + $0x1f0] sm:$0xff]
    %v1089 = vld [vmem:[%s2 + $0x1f8] sm:$0xff]
    %1090 = vmatprep.subr.mxu0 0.0
    %1091 = vmatpush1.msra.mxu0 %v1026
    %1092 = vmatprep.subr.mxu0 0.0
    %1093 = vmatpush1.msra.mxu0 %v1027
    %1094 = vmatprep.subr.mxu0 0.0
    %1095 = vmatpush1.msra.mxu0 %v1028
    %1096 = vmatprep.subr.mxu0 0.0
    %1097 = vmatpush1.msra.mxu0 %v1029
    %1098 = vmatprep.subr.mxu0 0.0
    %1099 = vmatpush1.msra.mxu0 %v1030
    %1100 = vmatprep.subr.mxu0 0.0
    %1101 = vmatpush1.msra.mxu0 %v1031
    %1102 = vmatprep.subr.mxu0 0.0
    %1103 = vmatpush1.msra.mxu0 %v1032
    %1104 = vmatprep.subr.mxu0 0.0
    %1105 = vmatpush1.msra.mxu0 %v1033
    %1106 = vmatprep.subr.mxu0 0.0
    %1107 = vmatpush1.msra.mxu0 %v1034
    %1108 = vmatprep.subr.mxu0 0.0
    %1109 = vmatpush1.msra.mxu0 %v1035
    %1110 = vmatprep.subr.mxu0 0.0
    %1111 = vmatpush1.msra.mxu0 %v1036
    %1112 = vmatprep.subr.mxu0 0.0
    %1113 = vmatpush1.msra.mxu0 %v1037
    %1114 = vmatprep.subr.mxu0 0.0
    %1115 = vmatpush1.msra.mxu0 %v1038
    %1116 = vmatprep.subr.mxu0 0.0
    %1117 = vmatpush1.msra.mxu0 %v1039
    %1118 = vmatprep.subr.mxu0 0.0
    %1119 = vmatpush1.msra.mxu0 %v1040
    %1120 = vmatprep.subr.mxu0 0.0
    %1121 = vmatpush1.msra.mxu0 %v1041
    %1122 = vmatprep.subr.mxu0 0.0
    %1123 = vmatpush1.msra.mxu0 %v1042
    %1124 = vmatprep.subr.mxu0 0.0
    %1125 = vmatpush1.msra.mxu0 %v1043
    %1126 = vmatprep.subr.mxu0 0.0
    %1127 = vmatpush1.msra.mxu0 %v1044
    %1128 = vmatprep.subr.mxu0 0.0
    %1129 = vmatpush1.msra.mxu0 %v1045
    %1130 = vmatprep.subr.mxu0 0.0
    %1131 = vmatpush1.msra.mxu0 %v1046
    %1132 = vmatprep.subr.mxu0 0.0
    %1133 = vmatpush1.msra.mxu0 %v1047
    %1134 = vmatprep.subr.mxu0 0.0
    %1135 = vmatpush1.msra.mxu0 %v1048
    %1136 = vmatprep.subr.mxu0 0.0
    %1137 = vmatpush1.msra.mxu0 %v1049
    %1138 = vmatprep.subr.mxu0 0.0
    %1139 = vmatpush1.msra.mxu0 %v1050
    %1140 = vmatprep.subr.mxu0 0.0
    %1141 = vmatpush1.msra.mxu0 %v1051
    %1142 = vmatprep.subr.mxu0 0.0
    %1143 = vmatpush1.msra.mxu0 %v1052
    %1144 = vmatprep.subr.mxu0 0.0
    %1145 = vmatpush1.msra.mxu0 %v1053
    %1146 = vmatprep.subr.mxu0 0.0
    %1147 = vmatpush1.msra.mxu0 %v1054
    %1148 = vmatprep.subr.mxu0 0.0
    %1149 = vmatpush1.msra.mxu0 %v1055
    %1150 = vmatprep.subr.mxu0 0.0
    %1151 = vmatpush1.msra.mxu0 %v1056
    %1152 = vmatprep.subr.mxu0 0.0
    %1153 = vmatpush1.msra.mxu0 %v1057
    %1154 = vmatprep.mubr.f32.mxu0 %v1023
    %1155 = vmatmul.mubr.f32.gmra.mrb[0].mxu0 %v1022
    %v1156 = vpop.f32.mrb[0].mxu0
    %v1157 = vadd.f32 0.0, %v1156
    %v1158 = vpop.f32.mrb[0].mxu0
    %1159 = vdwg.mxu0
    %1160 = vmatprep.subr.mxu0 0.0
    %1161 = vmatpush1.msra.mxu0 %v1058
    %1162 = vmatprep.subr.mxu0 0.0
    %1163 = vmatpush1.msra.mxu0 %v1059
    %1164 = vmatprep.subr.mxu0 0.0
    %1165 = vmatpush1.msra.mxu0 %v1060
    %1166 = vmatprep.subr.mxu0 0.0
    %1167 = vmatpush1.msra.mxu0 %v1061
    %1168 = vmatprep.subr.mxu0 0.0
    %1169 = vmatpush1.msra.mxu0 %v1062
    %1170 = vmatprep.subr.mxu0 0.0
    %1171 = vmatpush1.msra.mxu0 %v1063
    %1172 = vmatprep.subr.mxu0 0.0
    %1173 = vmatpush1.msra.mxu0 %v1064
    %1174 = vmatprep.subr.mxu0 0.0
    %1175 = vmatpush1.msra.mxu0 %v1065
    %1176 = vmatprep.subr.mxu0 0.0
    %1177 = vmatpush1.msra.mxu0 %v1066
    %1178 = vmatprep.subr.mxu0 0.0
    %1179 = vmatpush1.msra.mxu0 %v1067
    %1180 = vmatprep.subr.mxu0 0.0
    %1181 = vmatpush1.msra.mxu0 %v1068
    %1182 = vmatprep.subr.mxu0 0.0
    %1183 = vmatpush1.msra.mxu0 %v1069
    %1184 = vmatprep.subr.mxu0 0.0
    %1185 = vmatpush1.msra.mxu0 %v1070
    %1186 = vmatprep.subr.mxu0 0.0
    %1187 = vmatpush1.msra.mxu0 %v1071
    %1188 = vmatprep.subr.mxu0 0.0
    %1189 = vmatpush1.msra.mxu0 %v1072
    %1190 = vmatprep.subr.mxu0 0.0
    %1191 = vmatpush1.msra.mxu0 %v1073
    %1192 = vmatprep.subr.mxu0 0.0
    %1193 = vmatpush1.msra.mxu0 %v1074
    %1194 = vmatprep.subr.mxu0 0.0
    %1195 = vmatpush1.msra.mxu0 %v1075
    %1196 = vmatprep.subr.mxu0 0.0
    %1197 = vmatpush1.msra.mxu0 %v1076
    %1198 = vmatprep.subr.mxu0 0.0
    %1199 = vmatpush1.msra.mxu0 %v1077
    %1200 = vmatprep.subr.mxu0 0.0
    %1201 = vmatpush1.msra.mxu0 %v1078
    %1202 = vmatprep.subr.mxu0 0.0
    %1203 = vmatpush1.msra.mxu0 %v1079
    %1204 = vmatprep.subr.mxu0 0.0
    %1205 = vmatpush1.msra.mxu0 %v1080
    %1206 = vmatprep.subr.mxu0 0.0
    %1207 = vmatpush1.msra.mxu0 %v1081
    %1208 = vmatprep.subr.mxu0 0.0
    %1209 = vmatpush1.msra.mxu0 %v1082
    %1210 = vmatprep.subr.mxu0 0.0
    %1211 = vmatpush1.msra.mxu0 %v1083
    %1212 = vmatprep.subr.mxu0 0.0
    %1213 = vmatpush1.msra.mxu0 %v1084
    %1214 = vmatprep.subr.mxu0 0.0
    %1215 = vmatpush1.msra.mxu0 %v1085
    %1216 = vmatprep.subr.mxu0 0.0
    %1217 = vmatpush1.msra.mxu0 %v1086
    %1218 = vmatprep.subr.mxu0 0.0
    %1219 = vmatpush1.msra.mxu0 %v1087
    %1220 = vmatprep.subr.mxu0 0.0
    %1221 = vmatpush1.msra.mxu0 %v1088
    %1222 = vmatprep.subr.mxu0 0.0
    %1223 = vmatpush1.msra.mxu0 %v1089
    %1224 = vmatprep.mubr.f32.mxu0 %v1025
    %1225 = vmatmul.mubr.f32.gmra.mrb[0].mxu0 %v1024
    %v1226 = vpop.f32.mrb[0].mxu0
    %v1227 = vadd.f32 %v1157, %v1226
    %v1228 = vpop.f32.mrb[0].mxu0
    %1229 = vdwg.mxu0
    %v1230 = vld [vmem:[%s3] sm:$0xff]
    %v1231 = vld [vmem:[%s3 + $0x8] sm:$0xff]
    %v1232 = vld [vmem:[%s3 + $0x10] sm:$0xff]
    %v1233 = vld [vmem:[%s3 + $0x18] sm:$0xff]
    %v1234 = vld [vmem:[%s3 + $0x20] sm:$0xff]
    %v1235 = vld [vmem:[%s3 + $0x28] sm:$0xff]
    %v1236 = vld [vmem:[%s3 + $0x30] sm:$0xff]
    %v1237 = vld [vmem:[%s3 + $0x38] sm:$0xff]
    %s1238 = scalar_lea.vmem %s6, 1
    %v1239 = vld [vmem:[%s1238] ss:$4 sm:$0x3]
    %v1241 = vlaneseq
    %v1242 = vshrl.u32 %v1241, 7
    %v1243 = vsub.s32 0, %v1242
    %v1244 = vrot.slane %v1239, %v1243
    %v1245 = vlaneseq
    %v1246 = vshrl.u32 %v1245, 7
    %v1247 = vsub.s32 1, %v1246
    %v1248 = vrot.slane %v1239, %v1247
    %vm1251 = vcmask 261120
    %v1253 = vsel %vm1251, %v1227, 0
    %1255 = vmatprep.subr.mxu0 %v1231
    %1256 = vmatpush1.msra.mxu0 %v1230
    %1257 = vmatprep.subr.mxu0 %v1233
    %1258 = vmatpush1.msra.mxu0 %v1232
    %1259 = vmatprep.subr.mxu0 %v1235
    %1260 = vmatpush1.msra.mxu0 %v1234
    %1261 = vmatprep.subr.mxu0 %v1237
    %1262 = vmatpush1.msra.mxu0 %v1236
    %1263 = vmatprep.subr.mxu0 0.0
    %1264 = vmatpush1.msra.mxu0 0.0
    %1265 = vmatprep.subr.mxu0 0.0
    %1266 = vmatpush1.msra.mxu0 0.0
    %1267 = vmatprep.subr.mxu0 0.0
    %1268 = vmatpush1.msra.mxu0 0.0
    %1269 = vmatprep.subr.mxu0 0.0
    %1270 = vmatpush1.msra.mxu0 0.0
    %1271 = vmatprep.subr.mxu0 0.0
    %1272 = vmatpush1.msra.mxu0 0.0
    %1273 = vmatprep.subr.mxu0 0.0
    %1274 = vmatpush1.msra.mxu0 0.0
    %1275 = vmatprep.subr.mxu0 0.0
    %1276 = vmatpush1.msra.mxu0 0.0
    %1277 = vmatprep.subr.mxu0 0.0
    %1278 = vmatpush1.msra.mxu0 0.0
    %1279 = vmatprep.subr.mxu0 0.0
    %1280 = vmatpush1.msra.mxu0 0.0
    %1281 = vmatprep.subr.mxu0 0.0
    %1282 = vmatpush1.msra.mxu0 0.0
    %1283 = vmatprep.subr.mxu0 0.0
    %1284 = vmatpush1.msra.mxu0 0.0
    %1285 = vmatprep.subr.mxu0 0.0
    %1286 = vmatpush1.msra.mxu0 0.0
    %1287 = vmatprep.subr.mxu0 0.0
    %1288 = vmatpush1.msra.mxu0 0.0
    %1289 = vmatprep.subr.mxu0 0.0
    %1290 = vmatpush1.msra.mxu0 0.0
    %1291 = vmatprep.subr.mxu0 0.0
    %1292 = vmatpush1.msra.mxu0 0.0
    %1293 = vmatprep.subr.mxu0 0.0
    %1294 = vmatpush1.msra.mxu0 0.0
    %1295 = vmatprep.subr.mxu0 0.0
    %1296 = vmatpush1.msra.mxu0 0.0
    %1297 = vmatprep.subr.mxu0 0.0
    %1298 = vmatpush1.msra.mxu0 0.0
    %1299 = vmatprep.subr.mxu0 0.0
    %1300 = vmatpush1.msra.mxu0 0.0
    %1301 = vmatprep.subr.mxu0 0.0
    %1302 = vmatpush1.msra.mxu0 0.0
    %1303 = vmatprep.subr.mxu0 0.0
    %1304 = vmatpush1.msra.mxu0 0.0
    %1305 = vmatprep.subr.mxu0 0.0
    %1306 = vmatpush1.msra.mxu0 0.0
    %1307 = vmatprep.subr.mxu0 0.0
    %1308 = vmatpush1.msra.mxu0 0.0
    %1309 = vmatprep.subr.mxu0 0.0
    %1310 = vmatpush1.msra.mxu0 0.0
    %1311 = vmatprep.subr.mxu0 0.0
    %1312 = vmatpush1.msra.mxu0 0.0
    %1313 = vmatprep.subr.mxu0 0.0
    %1314 = vmatpush1.msra.mxu0 0.0
    %1315 = vmatprep.subr.mxu0 0.0
    %1316 = vmatpush1.msra.mxu0 0.0
    %1317 = vmatprep.subr.mxu0 0.0
    %1318 = vmatpush1.msra.mxu0 0.0
    %1319 = vmatprep.mubr.f32.mxu0 0.0
    %1320 = vmatmul.mubr.f32.gmra.mrb[0].mxu0 %v1253
    %v1321 = vpop.f32.mrb[0].mxu0
    %v1322 = vadd.f32 %v1244, %v1321
    %v1323 = vpop.f32.mrb[0].mxu0
    %v1324 = vadd.f32 %v1248, %v1323
    %1325 = vdwg.mxu0
    %v1326 = vld [vmem:[%s7] sm:$0x3]
    %v1327 = vld [vmem:[%s4] sm:$0x1f]
    %v1328 = vld [vmem:[%s4 + $0x8] sm:$0x1f]
    %s1329 = scalar_lea.vmem %s6, 2
    %v1330 = vld [vmem:[%s1329] ss:$4 sm:$0x3]
    %v1332 = vlaneseq
    %v1333 = vshrl.u32 %v1332, 7
    %v1334 = vsub.s32 0, %v1333
    %v1335 = vrot.slane %v1330, %v1334
    %v1336 = vlaneseq
    %v1337 = vshrl.u32 %v1336, 7
    %v1338 = vsub.s32 1, %v1337
    %v1339 = vrot.slane %v1330, %v1338
    %vm1342 = vcmask 39936
    %v1344 = vsel %vm1342, %v1326, 0
    %vm1346 = vcmask 1044480
    %v1348 = vsel %vm1346, %v1327, 0
    %v1351 = vsel %vm1346, %v1328, 0
    %1353 = vmatprep.subr.mxu0 %v1351
    %1354 = vmatpush1.msra.mxu0 %v1348
    %1355 = vmatprep.subr.mxu0 0.0
    %1356 = vmatpush1.msra.mxu0 0.0
    %1357 = vmatprep.subr.mxu0 0.0
    %1358 = vmatpush1.msra.mxu0 0.0
    %1359 = vmatprep.subr.mxu0 0.0
    %1360 = vmatpush1.msra.mxu0 0.0
    %1361 = vmatprep.subr.mxu0 0.0
    %1362 = vmatpush1.msra.mxu0 0.0
    %1363 = vmatprep.subr.mxu0 0.0
    %1364 = vmatpush1.msra.mxu0 0.0
    %1365 = vmatprep.subr.mxu0 0.0
    %1366 = vmatpush1.msra.mxu0 0.0
    %1367 = vmatprep.subr.mxu0 0.0
    %1368 = vmatpush1.msra.mxu0 0.0
    %1369 = vmatprep.subr.mxu0 0.0
    %1370 = vmatpush1.msra.mxu0 0.0
    %1371 = vmatprep.subr.mxu0 0.0
    %1372 = vmatpush1.msra.mxu0 0.0
    %1373 = vmatprep.subr.mxu0 0.0
    %1374 = vmatpush1.msra.mxu0 0.0
    %1375 = vmatprep.subr.mxu0 0.0
    %1376 = vmatpush1.msra.mxu0 0.0
    %1377 = vmatprep.subr.mxu0 0.0
    %1378 = vmatpush1.msra.mxu0 0.0
    %1379 = vmatprep.subr.mxu0 0.0
    %1380 = vmatpush1.msra.mxu0 0.0
    %1381 = vmatprep.subr.mxu0 0.0
    %1382 = vmatpush1.msra.mxu0 0.0
    %1383 = vmatprep.subr.mxu0 0.0
    %1384 = vmatpush1.msra.mxu0 0.0
    %1385 = vmatprep.subr.mxu0 0.0
    %1386 = vmatpush1.msra.mxu0 0.0
    %1387 = vmatprep.subr.mxu0 0.0
    %1388 = vmatpush1.msra.mxu0 0.0
    %1389 = vmatprep.subr.mxu0 0.0
    %1390 = vmatpush1.msra.mxu0 0.0
    %1391 = vmatprep.subr.mxu0 0.0
    %1392 = vmatpush1.msra.mxu0 0.0
    %1393 = vmatprep.subr.mxu0 0.0
    %1394 = vmatpush1.msra.mxu0 0.0
    %1395 = vmatprep.subr.mxu0 0.0
    %1396 = vmatpush1.msra.mxu0 0.0
    %1397 = vmatprep.subr.mxu0 0.0
    %1398 = vmatpush1.msra.mxu0 0.0
    %1399 = vmatprep.subr.mxu0 0.0
    %1400 = vmatpush1.msra.mxu0 0.0
    %1401 = vmatprep.subr.mxu0 0.0
    %1402 = vmatpush1.msra.mxu0 0.0
    %1403 = vmatprep.subr.mxu0 0.0
    %1404 = vmatpush1.msra.mxu0 0.0
    %1405 = vmatprep.subr.mxu0 0.0
    %1406 = vmatpush1.msra.mxu0 0.0
    %1407 = vmatprep.subr.mxu0 0.0
    %1408 = vmatpush1.msra.mxu0 0.0
    %1409 = vmatprep.subr.mxu0 0.0
    %1410 = vmatpush1.msra.mxu0 0.0
    %1411 = vmatprep.subr.mxu0 0.0
    %1412 = vmatpush1.msra.mxu0 0.0
    %1413 = vmatprep.subr.mxu0 0.0
    %1414 = vmatpush1.msra.mxu0 0.0
    %1415 = vmatprep.subr.mxu0 0.0
    %1416 = vmatpush1.msra.mxu0 0.0
    %1417 = vmatprep.mubr.f32.mxu0 0.0
    %1418 = vmatmul.mubr.f32.gmra.mrb[0].mxu0 %v1344
    %v1419 = vpop.f32.mrb[0].mxu0
    %v1420 = vadd.f32 %v1335, %v1419
    %v1421 = vpop.f32.mrb[0].mxu0
    %v1422 = vadd.f32 %v1339, %v1421
    %1423 = vdwg.mxu0
    %v1424 = vmul.f32 %v1322, %v1420
    %v1425 = vmul.f32 %v1324, %v1422
    %v1426 = vsub.f32 %v1424, %v1425
    %v1427 = vmul.f32 %v1322, %v1422
    %v1428 = vmul.f32 %v1324, %v1420
    %v1429 = vadd.f32 %v1427, %v1428
    %v1430 = vld [vmem:[%s5] sm:$0xff]
    %v1431 = vld [vmem:[%s5 + $0x8] sm:$0xff]
    %v1432 = vld [vmem:[%s5 + $0x10] sm:$0xff]
    %v1433 = vld [vmem:[%s5 + $0x18] sm:$0xff]
    %v1434 = vld [vmem:[%s5 + $0x20] sm:$0xff]
    %v1435 = vld [vmem:[%s5 + $0x28] sm:$0xff]
    %v1436 = vld [vmem:[%s5 + $0x30] sm:$0xff]
    %v1437 = vld [vmem:[%s5 + $0x38] sm:$0xff]
    %v1438 = vld [vmem:[%s5 + $0x40] sm:$0xff]
    %v1439 = vld [vmem:[%s5 + $0x48] sm:$0xff]
    %v1440 = vld [vmem:[%s5 + $0x50] sm:$0xff]
    %v1441 = vld [vmem:[%s5 + $0x58] sm:$0xff]
    %v1442 = vld [vmem:[%s5 + $0x60] sm:$0xff]
    %v1443 = vld [vmem:[%s5 + $0x68] sm:$0xff]
    %v1444 = vld [vmem:[%s5 + $0x70] sm:$0xff]
    %v1445 = vld [vmem:[%s5 + $0x78] sm:$0xff]
    %v1446 = vld [vmem:[%s5 + $0x80] sm:$0xff]
    %v1447 = vld [vmem:[%s5 + $0x88] sm:$0xff]
    %v1448 = vld [vmem:[%s5 + $0x90] sm:$0xff]
    %v1449 = vld [vmem:[%s5 + $0x98] sm:$0xff]
    %v1450 = vld [vmem:[%s5 + $0xa0] sm:$0xff]
    %v1451 = vld [vmem:[%s5 + $0xa8] sm:$0xff]
    %v1452 = vld [vmem:[%s5 + $0xb0] sm:$0xff]
    %v1453 = vld [vmem:[%s5 + $0xb8] sm:$0xff]
    %v1454 = vld [vmem:[%s5 + $0xc0] sm:$0xff]
    %v1455 = vld [vmem:[%s5 + $0xc8] sm:$0xff]
    %v1456 = vld [vmem:[%s5 + $0xd0] sm:$0xff]
    %v1457 = vld [vmem:[%s5 + $0xd8] sm:$0xff]
    %v1458 = vld [vmem:[%s5 + $0xe0] sm:$0xff]
    %v1459 = vld [vmem:[%s5 + $0xe8] sm:$0xff]
    %v1460 = vld [vmem:[%s5 + $0xf0] sm:$0xff]
    %v1461 = vld [vmem:[%s5 + $0xf8] sm:$0xff]
    %v1462 = vld [vmem:[%s6 + $0x3] sm:$0x1]
    %v1463 = vlaneseq
    %v1464 = vshrl.u32 %v1463, 7
    %v1465 = vsub.s32 0, %v1464
    %v1466 = vrot.slane %v1462, %v1465
    %1467 = vmatprep.subr.mxu0 0.0
    %1468 = vmatpush1.msra.mxu0 %v1430
    %1469 = vmatprep.subr.mxu0 0.0
    %1470 = vmatpush1.msra.mxu0 %v1431
    %1471 = vmatprep.subr.mxu0 0.0
    %1472 = vmatpush1.msra.mxu0 %v1432
    %1473 = vmatprep.subr.mxu0 0.0
    %1474 = vmatpush1.msra.mxu0 %v1433
    %1475 = vmatprep.subr.mxu0 0.0
    %1476 = vmatpush1.msra.mxu0 %v1434
    %1477 = vmatprep.subr.mxu0 0.0
    %1478 = vmatpush1.msra.mxu0 %v1435
    %1479 = vmatprep.subr.mxu0 0.0
    %1480 = vmatpush1.msra.mxu0 %v1436
    %1481 = vmatprep.subr.mxu0 0.0
    %1482 = vmatpush1.msra.mxu0 %v1437
    %1483 = vmatprep.subr.mxu0 0.0
    %1484 = vmatpush1.msra.mxu0 %v1438
    %1485 = vmatprep.subr.mxu0 0.0
    %1486 = vmatpush1.msra.mxu0 %v1439
    %1487 = vmatprep.subr.mxu0 0.0
    %1488 = vmatpush1.msra.mxu0 %v1440
    %1489 = vmatprep.subr.mxu0 0.0
    %1490 = vmatpush1.msra.mxu0 %v1441
    %1491 = vmatprep.subr.mxu0 0.0
    %1492 = vmatpush1.msra.mxu0 %v1442
    %1493 = vmatprep.subr.mxu0 0.0
    %1494 = vmatpush1.msra.mxu0 %v1443
    %1495 = vmatprep.subr.mxu0 0.0
    %1496 = vmatpush1.msra.mxu0 %v1444
    %1497 = vmatprep.subr.mxu0 0.0
    %1498 = vmatpush1.msra.mxu0 %v1445
    %1499 = vmatprep.subr.mxu0 0.0
    %1500 = vmatpush1.msra.mxu0 %v1446
    %1501 = vmatprep.subr.mxu0 0.0
    %1502 = vmatpush1.msra.mxu0 %v1447
    %1503 = vmatprep.subr.mxu0 0.0
    %1504 = vmatpush1.msra.mxu0 %v1448
    %1505 = vmatprep.subr.mxu0 0.0
    %1506 = vmatpush1.msra.mxu0 %v1449
    %1507 = vmatprep.subr.mxu0 0.0
    %1508 = vmatpush1.msra.mxu0 %v1450
    %1509 = vmatprep.subr.mxu0 0.0
    %1510 = vmatpush1.msra.mxu0 %v1451
    %1511 = vmatprep.subr.mxu0 0.0
    %1512 = vmatpush1.msra.mxu0 %v1452
    %1513 = vmatprep.subr.mxu0 0.0
    %1514 = vmatpush1.msra.mxu0 %v1453
    %1515 = vmatprep.subr.mxu0 0.0
    %1516 = vmatpush1.msra.mxu0 %v1454
    %1517 = vmatprep.subr.mxu0 0.0
    %1518 = vmatpush1.msra.mxu0 %v1455
    %1519 = vmatprep.subr.mxu0 0.0
    %1520 = vmatpush1.msra.mxu0 %v1456
    %1521 = vmatprep.subr.mxu0 0.0
    %1522 = vmatpush1.msra.mxu0 %v1457
    %1523 = vmatprep.subr.mxu0 0.0
    %1524 = vmatpush1.msra.mxu0 %v1458
    %1525 = vmatprep.subr.mxu0 0.0
    %1526 = vmatpush1.msra.mxu0 %v1459
    %1527 = vmatprep.subr.mxu0 0.0
    %1528 = vmatpush1.msra.mxu0 %v1460
    %1529 = vmatprep.subr.mxu0 0.0
    %1530 = vmatpush1.msra.mxu0 %v1461
    %1531 = vmatprep.mubr.f32.mxu0 %v1429
    %1532 = vmatmul.mubr.f32.gmra.mrb[0].mxu0 %v1426
    %v1533 = vpop.f32.mrb[0].mxu0
    %v1534 = vadd.f32 %v1466, %v1533
    %v1535 = vpop.f32.mrb[0].mxu0
    %1536 = vdwg.mxu0
    %v1537 = vmax.f32 %v1534, 0.0
    %1538 = vst [vmem:[#allocation2] sm:$0x3] %v1537
    // Predicated region
    $region34: #{cnn_with_clinical_forward.1} parent=1 // pred_check
      _
    $region35: #{cnn_with_clinical_forward.1} parent=1 // pred_check_branch
      %1540 = sbr.rel (0) target = $region37
    $region36: #{cnn_with_clinical_forward.1} parent=1 // pred_region
      %s1542 = ssub.s32 32, 32
      %1543 = vsyncadd [#allocation3], %s1542
      %s1545 = sshll.u32 [#allocation2], 4
      %s1546 = int_to_ptr.vmem [resolvable:$true] %s1545
      %1548 = dma.vmem_to_hbm [thread:$0]  %s1546, 32, %s8, [#allocation3]
    $region37: #{cnn_with_clinical_forward.1} parent=1 // pred_fallthru
      _
    // Predicated region
    $region38: #{cnn_with_clinical_forward.1} parent=1 // pred_check
      _
    $region39: #{cnn_with_clinical_forward.1} parent=1 // pred_check_branch
      %1550 = sbr.rel (0) target = $region41
    $region40: #{cnn_with_clinical_forward.1} parent=1 // pred_region
      %1551 = dma.done [#allocation3], 32
    $region41: #{cnn_with_clinical_forward.1} parent=1 // pred_fallthru
      _
    %1552 = vsyncpa [#allocation3], 1

</llo_original>
